<compile_context>
chip_gen: v7x
topology: tpu7x:2x2x1
jax: 0.10.0
libtpu: 0.0.40
codegen_flags: <defaults>
</compile_context>

<pallas_src>
import functools
import math

import jax
import jax.numpy as jnp
from jax import lax
from jax.experimental import pallas as pl
from jax.experimental.pallas import tpu as pltpu


# ----------------------------- helpers --------------------------------------

def _round_up(n, m):
    return ((n + m - 1) // m) * m


def _layernorm(x, w, b, eps=1e-5):
    # x: (R, D) f32, w/b: (1, D) f32
    mu = jnp.mean(x, axis=-1, keepdims=True)
    var = jnp.mean((x - mu) ** 2, axis=-1, keepdims=True)
    return (x - mu) * lax.rsqrt(var + eps) * w + b


# ----------------------------- encoder layer kernel --------------------------

def encoder_layer_kernel(src_ref,                       # (TQ, D)   activations (residual)
                         q_ref,                         # (H, TQ, hd)    bf16 (scale folded)
                         k_ref,                         # (H, hd, S_pad) bf16
                         v_ref,                         # (H, S_pad, hd) bf16
                         wo_ref, bo_ref,                # (H, hd, D) bf16, (1, D) f32
                         ln1_w_ref, ln1_b_ref,          # (1, D) f32
                         w1_ref, b1_ref,                # (D, F) bf16, (1, F) f32
                         w2_ref, b2_ref,                # (F, D) bf16, (1, D) f32
                         ln2_w_ref, ln2_b_ref,          # (1, D) f32
                         lnf_w_ref, lnf_b_ref,          # (1, D) f32 (fused final norm)
                         o_ref,                         # (TQ, D)
                         acc_sc,                        # (TQ, D) f32 scratch
                         *, nhead, s_valid, s_pad, apply_final_ln):
    # TODO(synk): src_mask / src_key_padding_mask are not supported (None path only).

    # Additive key-mask for the padded sequence tail (static, hoisted).
    if s_pad != s_valid:
        kidx = lax.broadcasted_iota(jnp.int32, (1, s_pad), 1)
        key_bias = jnp.where(kidx < s_valid, 0.0, -1e30).astype(jnp.float32)
    else:
        key_bias = None

    acc_sc[...] = jnp.zeros_like(acc_sc)

    # --- multi-head attention: head-major fori_loop (bounded live ranges) -----
    def head_body(h, carry):
        # (TQ, hd) @ (hd, S_pad) -> (TQ, S_pad), f32 MXU accumulation.
        s = jnp.dot(q_ref[h], k_ref[h], preferred_element_type=jnp.float32)
        if key_bias is not None:
            s = s + key_bias
        s = s - jnp.max(s, axis=-1, keepdims=True)
        p = jnp.exp(s)
        p = p / jnp.sum(p, axis=-1, keepdims=True)          # exact divide (parity)
        attn_h = jnp.dot(p.astype(jnp.bfloat16), v_ref[h],
                         preferred_element_type=jnp.float32)           # (TQ, hd)
        # Fold this head's slice of the output projection here: avoids masked
        # partial stores into a concat slab and any head-concat relayout.
        acc_sc[...] += jnp.dot(attn_h.astype(jnp.bfloat16), wo_ref[h],
                               preferred_element_type=jnp.float32)
        return carry

    lax.fori_loop(0, nhead, head_body, 0)

    src_blk = src_ref[...].astype(jnp.float32)
    attn = acc_sc[...] + bo_ref[...]

    # --- residual + LayerNorm 1 ------------------------------------------------
    x = _layernorm(src_blk + attn, ln1_w_ref[...], ln1_b_ref[...])     # (TQ, D) f32

    # --- feed-forward: two full GEMMs, (TQ, F) intermediate lives in VMEM -------
    x_bf = x.astype(jnp.bfloat16)
    h1 = jnp.dot(x_bf, w1_ref[...], preferred_element_type=jnp.float32) + b1_ref[...]
    h1 = jnp.maximum(h1, 0.0).astype(jnp.bfloat16)
    ff = jnp.dot(h1, w2_ref[...], preferred_element_type=jnp.float32) + b2_ref[...]

    # --- residual + LayerNorm 2 (+ fused final norm on the last layer) ----------
    y = _layernorm(x + ff, ln2_w_ref[...], ln2_b_ref[...])
    if apply_final_ln:
        y = _layernorm(y, lnf_w_ref[...], lnf_b_ref[...])
    o_ref[...] = y.astype(o_ref.dtype)                                 # lane-dense store


# ----------------------------- wrappers --------------------------------------

def encoder_layer_apply(src_p, pos_p, p, nhead, *, s_valid, block_q,
                        final_ln=None, out_dtype=jnp.bfloat16):
    """One DETR encoder layer on already-padded (B, S_pad, D) activations."""
    B, S_pad, D = src_p.shape
    hd = D // nhead
    F = p['l1_w'].shape[0]
    TQ = block_q
    NQ = S_pad // TQ

    bf, f32 = jnp.bfloat16, jnp.float32
    scale = 1.0 / math.sqrt(hd)

    # --- Q/K/V projections hoisted out of the kernel (XLA GEMMs, bf16 operands,
    #     f32 accumulation), laid out head-major for the kernel. --------------
    wq = p['in_proj_w'][:D].T.astype(bf)
    wk = p['in_proj_w'][D:2 * D].T.astype(bf)
    wv = p['in_proj_w'][2 * D:].T.astype(bf)
    bq = p['in_proj_b'][:D]
    bk = p['in_proj_b'][D:2 * D]
    bv = p['in_proj_b'][2 * D:]

    qk_in = (src_p.astype(f32) + pos_p.astype(f32)).astype(bf)
    s_bf = src_p.astype(f32).astype(bf)

    q = (jnp.einsum('bsd,de->bse', qk_in, wq, preferred_element_type=f32) + bq) * scale
    k = jnp.einsum('bsd,de->bse', qk_in, wk, preferred_element_type=f32) + bk
    v = jnp.einsum('bsd,de->bse', s_bf, wv, preferred_element_type=f32) + bv

    q_hm = q.reshape(B, S_pad, nhead, hd).transpose(0, 2, 1, 3).astype(bf)   # (B,H,S,hd)
    k_hm = k.reshape(B, S_pad, nhead, hd).transpose(0, 2, 3, 1).astype(bf)   # (B,H,hd,S)
    v_hm = v.reshape(B, S_pad, nhead, hd).transpose(0, 2, 1, 3).astype(bf)   # (B,H,S,hd)

    wo = p['out_w'].T.reshape(nhead, hd, D).astype(bf)                       # head-major
    bo = p['out_b'].reshape(1, D).astype(f32)
    ln1_w = p['ln1_w'].reshape(1, D).astype(f32)
    ln1_b = p['ln1_b'].reshape(1, D).astype(f32)
    w1 = p['l1_w'].T.astype(bf)                                              # (D, F)
    b1 = p['l1_b'].reshape(1, F).astype(f32)
    w2 = p['l2_w'].T.astype(bf)                                              # (F, D)
    b2 = p['l2_b'].reshape(1, D).astype(f32)
    ln2_w = p['ln2_w'].reshape(1, D).astype(f32)
    ln2_b = p['ln2_b'].reshape(1, D).astype(f32)

    if final_ln is not None:
        lnf_w = final_ln['w'].reshape(1, D).astype(f32)
        lnf_b = final_ln['b'].reshape(1, D).astype(f32)
    else:
        lnf_w = jnp.ones((1, D), f32)
        lnf_b = jnp.zeros((1, D), f32)

    args = (src_p, q_hm, k_hm, v_hm, wo, bo, ln1_w, ln1_b,
            w1, b1, w2, b2, ln2_w, ln2_b, lnf_w, lnf_b)

    def _const_spec(a):
        nd = a.ndim
        return pl.BlockSpec(a.shape, lambda b, q, _nd=nd: (0,) * _nd)

    in_specs = [
        pl.BlockSpec((None, TQ, D), lambda b, q: (b, q, 0)),                 # src block
        pl.BlockSpec((None, nhead, TQ, hd), lambda b, q: (b, 0, q, 0)),      # Q block
        pl.BlockSpec((None, nhead, hd, S_pad), lambda b, q: (b, 0, 0, 0)),   # K (full seq)
        pl.BlockSpec((None, nhead, S_pad, hd), lambda b, q: (b, 0, 0, 0)),   # V (full seq)
    ] + [_const_spec(a) for a in args[4:]]

    kernel = functools.partial(encoder_layer_kernel, nhead=nhead,
                               s_valid=s_valid, s_pad=S_pad,
                               apply_final_ln=final_ln is not None)

    return pl.pallas_call(
        kernel,
        out_shape=jax.ShapeDtypeStruct((B, S_pad, D), out_dtype),
        grid=(B, NQ),
        in_specs=in_specs,
        out_specs=pl.BlockSpec((None, TQ, D), lambda b, q: (b, q, 0)),
        scratch_shapes=[pltpu.VMEM((TQ, D), jnp.float32)],
        compiler_params=pltpu.CompilerParams(
            # No cross-iteration carry anymore: both axes parallel (v7x megacore).
            dimension_semantics=("parallel", "parallel"),
            vmem_limit_bytes=32 * 1024 * 1024,
        ),
    )(*args)


def transformer_encoder(src, pos, layer_params, nhead, norm_params=None,
                        mask=None, src_key_padding_mask=None):
    assert mask is None and src_key_padding_mask is None, "masks not supported"
    B, S, D = src.shape

    # Unconditional query blocking: pad S up to a multiple of the block size.
    TQ = 128 if S >= 128 else 8
    S_pad = _round_up(S, TQ)
    if S_pad != S:
        padw = ((0, 0), (0, S_pad - S), (0, 0))
        src_p = jnp.pad(src, padw)
        pos_p = jnp.pad(pos, padw)
    else:
        src_p, pos_p = src, pos

    n = len(layer_params)
    out = src_p
    for i, p in enumerate(layer_params):
        last = i == n - 1
        out = encoder_layer_apply(
            out, pos_p, p, nhead, s_valid=S, block_q=TQ,
            final_ln=norm_params if (last and norm_params is not None) else None,
            out_dtype=src.dtype if last else jnp.bfloat16)
    return out[:, :S, :]


# ----------------------------- params & reference ----------------------------

def init_layer_params(key, d_model, nhead, dim_ff):
    ks = jax.random.split(key, 4)
    std = 0.05
    return {
        'in_proj_w': jax.random.normal(ks[0], (3 * d_model, d_model), jnp.float32) * std,
        'in_proj_b': jnp.linspace(-0.01, 0.01, 3 * d_model, dtype=jnp.float32),
        'out_w':     jax.random.normal(ks[1], (d_model, d_model), jnp.float32) * std,
        'out_b':     jnp.zeros((d_model,), jnp.float32),
        'ln1_w':     jnp.ones((d_model,), jnp.float32),
        'ln1_b':     jnp.zeros((d_model,), jnp.float32),
        'l1_w':      jax.random.normal(ks[2], (dim_ff, d_model), jnp.float32) * std,
        'l1_b':      jnp.zeros((dim_ff,), jnp.float32),
        'l2_w':      jax.random.normal(ks[3], (d_model, dim_ff), jnp.float32) * std,
        'l2_b':      jnp.zeros((d_model,), jnp.float32),
        'ln2_w':     jnp.ones((d_model,), jnp.float32),
        'ln2_b':     jnp.zeros((d_model,), jnp.float32),
    }


def _bf16(x):
    return x.astype(jnp.bfloat16)


def _mm(a, b):
    # Mirrors the kernel's precision: bf16 operands, f32 accumulation.
    return jnp.dot(_bf16(a), _bf16(b), preferred_element_type=jnp.float32)


def _ref_layernorm(x, w, b, eps=1e-5):
    mu = x.mean(-1, keepdims=True)
    var = ((x - mu) ** 2).mean(-1, keepdims=True)
    return (x - mu) / jnp.sqrt(var + eps) * w + b


def _ref_layer(src, pos, p, nhead):
    B, S, D = src.shape
    hd = D // nhead
    qk_in = src + pos
    q = (_mm(qk_in, p['in_proj_w'][:D].T) + p['in_proj_b'][:D]) / math.sqrt(hd)
    k = _mm(qk_in, p['in_proj_w'][D:2 * D].T) + p['in_proj_b'][D:2 * D]
    v = _mm(src, p['in_proj_w'][2 * D:].T) + p['in_proj_b'][2 * D:]
    q = q.reshape(B, S, nhead, hd).transpose(0, 2, 1, 3)
    k = k.reshape(B, S, nhead, hd).transpose(0, 2, 1, 3)
    v = v.reshape(B, S, nhead, hd).transpose(0, 2, 1, 3)
    s = jnp.einsum('bhqd,bhkd->bhqk', _bf16(q), _bf16(k),
                   preferred_element_type=jnp.float32)
    pr = jax.nn.softmax(s, axis=-1)
    o = jnp.einsum('bhqk,bhkd->bhqd', _bf16(pr), _bf16(v),
                   preferred_element_type=jnp.float32)
    o = o.transpose(0, 2, 1, 3).reshape(B, S, D)
    attn = _mm(o, p['out_w'].T) + p['out_b']
    x = _ref_layernorm(src + attn, p['ln1_w'], p['ln1_b'])
    h1 = jnp.maximum(_mm(x, p['l1_w'].T) + p['l1_b'], 0.0)
    ff = _mm(h1, p['l2_w'].T) + p['l2_b']
    return _ref_layernorm(x + ff, p['ln2_w'], p['ln2_b'])


def _ref_encoder(src, pos, layer_params, nhead, norm_params):
    n = len(layer_params)
    out = src
    for i, p in enumerate(layer_params):
        out = _ref_layer(out.astype(jnp.float32), pos, p, nhead)
        if i != n - 1:
            out = out.astype(jnp.bfloat16)   # kernel carries bf16 activations between layers
    if norm_params is not None:
        out = _ref_layernorm(out, norm_params['w'], norm_params['b'])
    return out


# ----------------------------- main -------------------------------------------

if __name__ == "__main__":
    # S = 10 deliberately exercises the padding + key-mask + multi-query-block path.
    B, S, D = 2, 10, 32
    nhead, dim_ff, num_layers = 4, 64, 2

    key = jax.random.PRNGKey(0)
    k_src, k_pos, *k_layers = jax.random.split(key, 2 + num_layers)

    src = jax.random.normal(k_src, (B, S, D), jnp.float32)
    pos = jax.random.normal(k_pos, (B, S, D), jnp.float32)

    layer_params = [init_layer_params(k, D, nhead, dim_ff) for k in k_layers]
    norm_params = {'w': jnp.ones((D,), jnp.float32), 'b': jnp.zeros((D,), jnp.float32)}

    out = transformer_encoder(src, pos, layer_params, nhead, norm_params)
    out = jax.block_until_ready(out)

    ref = _ref_encoder(src, pos, layer_params, nhead, norm_params)
    assert out.shape == (B, S, D)
    err = float(jnp.max(jnp.abs(out - ref)))
    assert jnp.allclose(out, ref, atol=2e-2, rtol=2e-2), f"mismatch vs reference (max abs err {err})"

    print("KERNEL_OK")
</pallas_src>

<mosaic_0001>
module attributes {stable_mosaic.version = 11 : i64} {
  func.func @encoder_layer_kernel(%arg0: i32, %arg1: i32, %arg2: memref<1x8x32xf32, #tpu.memory_space<vmem>>, %arg3: memref<1x4x8x8xbf16, #tpu.memory_space<vmem>>, %arg4: memref<1x4x8x16xbf16, #tpu.memory_space<vmem>>, %arg5: memref<1x4x16x8xbf16, #tpu.memory_space<vmem>>, %arg6: memref<4x8x32xbf16, #tpu.memory_space<vmem>>, %arg7: memref<1x32xf32, #tpu.memory_space<vmem>>, %arg8: memref<1x32xf32, #tpu.memory_space<vmem>>, %arg9: memref<1x32xf32, #tpu.memory_space<vmem>>, %arg10: memref<32x64xbf16, #tpu.memory_space<vmem>>, %arg11: memref<1x64xf32, #tpu.memory_space<vmem>>, %arg12: memref<64x32xbf16, #tpu.memory_space<vmem>>, %arg13: memref<1x32xf32, #tpu.memory_space<vmem>>, %arg14: memref<1x32xf32, #tpu.memory_space<vmem>>, %arg15: memref<1x32xf32, #tpu.memory_space<vmem>>, %arg16: memref<1x32xf32, #tpu.memory_space<vmem>>, %arg17: memref<1x32xf32, #tpu.memory_space<vmem>>, %arg18: memref<1x8x32xbf16, #tpu.memory_space<vmem>>, %arg19: memref<8x32xf32, #tpu.memory_space<vmem>>) attributes {dimension_semantics = [#tpu.dimension_semantics<parallel>, #tpu.dimension_semantics<parallel>], iteration_bounds = array<i64: 2, 2>, scalar_prefetch = 0 : i64, scratch_operands = 1 : i64, tpu.core_type = #tpu.core_type<tc>, window_params = [{transform_indices = @transform_0, window_bounds = array<i64: 1, 8, 32>}, {transform_indices = @transform_1, window_bounds = array<i64: 1, 4, 8, 8>}, {transform_indices = @transform_2, window_bounds = array<i64: 1, 4, 8, 16>}, {transform_indices = @transform_3, window_bounds = array<i64: 1, 4, 16, 8>}, {pipeline_mode = #tpu.pipeline_mode<synchronous>, transform_indices = @transform_4, window_bounds = array<i64: 4, 8, 32>}, {pipeline_mode = #tpu.pipeline_mode<synchronous>, transform_indices = @transform_5, window_bounds = array<i64: 1, 32>}, {pipeline_mode = #tpu.pipeline_mode<synchronous>, transform_indices = @transform_6, window_bounds = array<i64: 1, 32>}, {pipeline_mode = #tpu.pipeline_mode<synchronous>, transform_indices = @transform_7, window_bounds = array<i64: 1, 32>}, {pipeline_mode = #tpu.pipeline_mode<synchronous>, transform_indices = @transform_8, window_bounds = array<i64: 32, 64>}, {pipeline_mode = #tpu.pipeline_mode<synchronous>, transform_indices = @transform_9, window_bounds = array<i64: 1, 64>}, {pipeline_mode = #tpu.pipeline_mode<synchronous>, transform_indices = @transform_10, window_bounds = array<i64: 64, 32>}, {pipeline_mode = #tpu.pipeline_mode<synchronous>, transform_indices = @transform_11, window_bounds = array<i64: 1, 32>}, {pipeline_mode = #tpu.pipeline_mode<synchronous>, transform_indices = @transform_12, window_bounds = array<i64: 1, 32>}, {pipeline_mode = #tpu.pipeline_mode<synchronous>, transform_indices = @transform_13, window_bounds = array<i64: 1, 32>}, {pipeline_mode = #tpu.pipeline_mode<synchronous>, transform_indices = @transform_14, window_bounds = array<i64: 1, 32>}, {pipeline_mode = #tpu.pipeline_mode<synchronous>, transform_indices = @transform_15, window_bounds = array<i64: 1, 32>}, {transform_indices = @transform_16, window_bounds = array<i64: 1, 8, 32>}]} {
    %0 = tpu.iota {dimensions = array<i32: 1>} : vector<1x16xi32>
    %c10_i32 = arith.constant 10 : i32
    %1 = vector.broadcast %c10_i32 : i32 to vector<1x16xi32>
    %2 = arith.cmpi slt, %0, %1 : vector<1x16xi32>
    %cst = arith.constant 0.000000e+00 : f32
    %cst_0 = arith.constant -1.000000e+30 : f32
    %3 = vector.broadcast %cst : f32 to vector<1x16xf32>
    %4 = vector.broadcast %cst_0 : f32 to vector<1x16xf32>
    %5 = arith.select %2, %3, %4 : vector<1x16xi1>, vector<1x16xf32>
    %cst_1 = arith.constant 0.000000e+00 : f32
    %6 = vector.broadcast %cst_1 : f32 to vector<8x32xf32>
    %c0 = arith.constant 0 : index
    %c0_2 = arith.constant 0 : index
    %7 = vector.load %arg19[%c0, %c0_2] : memref<8x32xf32, #tpu.memory_space<vmem>>, vector<8x32xf32>
    tpu.vector_store %arg19[%c0, %c0_2], %6 {strides = array<i32>} : memref<8x32xf32, #tpu.memory_space<vmem>>, vector<8x32xf32>,
    %c0_i32 = arith.constant 0 : i32
    %c4_i32 = arith.constant 4 : i32
    %8 = arith.addi %c0_i32, %c4_i32 : i32
    %c1_i32 = arith.constant 1 : i32
    scf.for %arg20 = %c0_i32 to %8 step %c1_i32  : i32 {
      %c0_43 = arith.constant 0 : index
      %83 = arith.index_cast %arg20 : i32 to index
      %c0_44 = arith.constant 0 : index
      %c0_45 = arith.constant 0 : index
      %84 = vector.load %arg3[%c0_43, %83, %c0_44, %c0_45] : memref<1x4x8x8xbf16, #tpu.memory_space<vmem>>, vector<1x1x8x8xbf16>
      %85 = vector.shape_cast %84 : vector<1x1x8x8xbf16> to vector<8x8xbf16>
      %c0_46 = arith.constant 0 : index
      %86 = arith.index_cast %arg20 : i32 to index
      %c0_47 = arith.constant 0 : index
      %c0_48 = arith.constant 0 : index
      %87 = vector.load %arg4[%c0_46, %86, %c0_47, %c0_48] : memref<1x4x8x16xbf16, #tpu.memory_space<vmem>>, vector<1x1x8x16xbf16>
      %88 = vector.shape_cast %87 : vector<1x1x8x16xbf16> to vector<8x16xbf16>
      %cst_49 = arith.constant dense<0.000000e+00> : vector<8x16xf32>
      %89 = tpu.matmul %85, %88, %cst_49 {dimension_numbers = #tpu.dot_dimension_numbers<[1], [0], [0], [1], [0, 0, 1, 1], [], []>} : vector<8x8xbf16>, vector<8x16xbf16>, vector<8x16xf32> -> vector<8x16xf32>
      %90 = vector.broadcast %5 : vector<1x16xf32> to vector<8x16xf32>
      %91 = arith.addf %89, %90 : vector<8x16xf32>
      %cst_50 = arith.constant dense<0xFF800000> : vector<8xf32>
      %92 = vector.multi_reduction <maximumf>, %91, %cst_50 [1] : vector<8x16xf32> to vector<8xf32>
      %93 = vector.shape_cast %92 : vector<8xf32> to vector<8x1xf32>
      %94 = vector.broadcast %93 : vector<8x1xf32> to vector<8x16xf32>
      %95 = arith.subf %91, %94 : vector<8x16xf32>
      %96 = math.exp %95 : vector<8x16xf32>
      %cst_51 = arith.constant dense<0.000000e+00> : vector<8xf32>
      %97 = vector.multi_reduction <add>, %96, %cst_51 [1] : vector<8x16xf32> to vector<8xf32>
      %98 = vector.shape_cast %97 : vector<8xf32> to vector<8x1xf32>
      %99 = vector.broadcast %98 : vector<8x1xf32> to vector<8x16xf32>
      %100 = arith.divf %96, %99 : vector<8x16xf32>
      %101 = arith.truncf %100 : vector<8x16xf32> to vector<8x16xbf16>
      %c0_52 = arith.constant 0 : index
      %102 = arith.index_cast %arg20 : i32 to index
      %c0_53 = arith.constant 0 : index
      %c0_54 = arith.constant 0 : index
      %103 = vector.load %arg5[%c0_52, %102, %c0_53, %c0_54] : memref<1x4x16x8xbf16, #tpu.memory_space<vmem>>, vector<1x1x16x8xbf16>
      %104 = vector.shape_cast %103 : vector<1x1x16x8xbf16> to vector<16x8xbf16>
      %cst_55 = arith.constant dense<0.000000e+00> : vector<8x8xf32>
      %105 = tpu.matmul %101, %104, %cst_55 {dimension_numbers = #tpu.dot_dimension_numbers<[1], [0], [0], [1], [0, 0, 1, 1], [], []>} : vector<8x16xbf16>, vector<16x8xbf16>, vector<8x8xf32> -> vector<8x8xf32>
      %c0_56 = arith.constant 0 : index
      %c0_57 = arith.constant 0 : index
      %106 = vector.load %arg19[%c0_56, %c0_57] : memref<8x32xf32, #tpu.memory_space<vmem>>, vector<8x32xf32>
      %107 = arith.truncf %105 : vector<8x8xf32> to vector<8x8xbf16>
      %108 = arith.index_cast %arg20 : i32 to index
      %c0_58 = arith.constant 0 : index
      %c0_59 = arith.constant 0 : index
      %109 = vector.load %arg6[%108, %c0_58, %c0_59] : memref<4x8x32xbf16, #tpu.memory_space<vmem>>, vector<1x8x32xbf16>
      %110 = vector.shape_cast %109 : vector<1x8x32xbf16> to vector<8x32xbf16>
      %cst_60 = arith.constant dense<0.000000e+00> : vector<8x32xf32>
      %111 = tpu.matmul %107, %110, %cst_60 {dimension_numbers = #tpu.dot_dimension_numbers<[1], [0], [0], [1], [0, 0, 1, 1], [], []>} : vector<8x8xbf16>, vector<8x32xbf16>, vector<8x32xf32> -> vector<8x32xf32>
      %112 = arith.addf %106, %111 : vector<8x32xf32>
      %c0_61 = arith.constant 0 : index
      %c0_62 = arith.constant 0 : index
      %113 = vector.load %arg19[%c0_61, %c0_62] : memref<8x32xf32, #tpu.memory_space<vmem>>, vector<8x32xf32>
      tpu.vector_store %arg19[%c0_61, %c0_62], %112 {strides = array<i32>} : memref<8x32xf32, #tpu.memory_space<vmem>>, vector<8x32xf32>,
    }
    %c4_i32_3 = arith.constant 4 : i32
    %c0_4 = arith.constant 0 : index
    %c0_5 = arith.constant 0 : index
    %c0_6 = arith.constant 0 : index
    %9 = vector.load %arg2[%c0_4, %c0_5, %c0_6] : memref<1x8x32xf32, #tpu.memory_space<vmem>>, vector<1x8x32xf32>
    %10 = vector.shape_cast %9 : vector<1x8x32xf32> to vector<8x32xf32>
    %c0_7 = arith.constant 0 : index
    %c0_8 = arith.constant 0 : index
    %11 = vector.load %arg19[%c0_7, %c0_8] : memref<8x32xf32, #tpu.memory_space<vmem>>, vector<8x32xf32>
    %c0_9 = arith.constant 0 : index
    %c0_10 = arith.constant 0 : index
    %12 = vector.load %arg7[%c0_9, %c0_10] : memref<1x32xf32, #tpu.memory_space<vmem>>, vector<1x32xf32>
    %13 = vector.broadcast %12 : vector<1x32xf32> to vector<8x32xf32>
    %14 = arith.addf %11, %13 : vector<8x32xf32>
    %15 = arith.addf %10, %14 : vector<8x32xf32>
    %c0_11 = arith.constant 0 : index
    %c0_12 = arith.constant 0 : index
    %16 = vector.load %arg8[%c0_11, %c0_12] : memref<1x32xf32, #tpu.memory_space<vmem>>, vector<1x32xf32>
    %c0_13 = arith.constant 0 : index
    %c0_14 = arith.constant 0 : index
    %17 = vector.load %arg9[%c0_13, %c0_14] : memref<1x32xf32, #tpu.memory_space<vmem>>, vector<1x32xf32>
    %cst_15 = arith.constant dense<0.000000e+00> : vector<8xf32>
    %18 = vector.multi_reduction <add>, %15, %cst_15 [1] : vector<8x32xf32> to vector<8xf32>
    %19 = vector.shape_cast %18 : vector<8xf32> to vector<8x1xf32>
    %cst_16 = arith.constant 3.200000e+01 : f32
    %20 = vector.broadcast %cst_16 : f32 to vector<8x1xf32>
    %21 = arith.divf %19, %20 : vector<8x1xf32>
    %22 = vector.broadcast %21 : vector<8x1xf32> to vector<8x32xf32>
    %23 = arith.subf %15, %22 : vector<8x32xf32>
    %24 = arith.mulf %23, %23 : vector<8x32xf32>
    %cst_17 = arith.constant dense<0.000000e+00> : vector<8xf32>
    %25 = vector.multi_reduction <add>, %24, %cst_17 [1] : vector<8x32xf32> to vector<8xf32>
    %26 = vector.shape_cast %25 : vector<8xf32> to vector<8x1xf32>
    %cst_18 = arith.constant 3.200000e+01 : f32
    %27 = vector.broadcast %cst_18 : f32 to vector<8x1xf32>
    %28 = arith.divf %26, %27 : vector<8x1xf32>
    %29 = vector.broadcast %21 : vector<8x1xf32> to vector<8x32xf32>
    %30 = arith.subf %15, %29 : vector<8x32xf32>
    %cst_19 = arith.constant 9.99999974E-6 : f32
    %31 = vector.broadcast %cst_19 : f32 to vector<8x1xf32>
    %32 = arith.addf %28, %31 : vector<8x1xf32>
    %33 = math.rsqrt %32 : vector<8x1xf32>
    %34 = vector.broadcast %33 : vector<8x1xf32> to vector<8x32xf32>
    %35 = arith.mulf %30, %34 : vector<8x32xf32>
    %36 = vector.broadcast %16 : vector<1x32xf32> to vector<8x32xf32>
    %37 = arith.mulf %35, %36 : vector<8x32xf32>
    %38 = vector.broadcast %17 : vector<1x32xf32> to vector<8x32xf32>
    %39 = arith.addf %37, %38 : vector<8x32xf32>
    %40 = arith.truncf %39 : vector<8x32xf32> to vector<8x32xbf16>
    %c0_20 = arith.constant 0 : index
    %c0_21 = arith.constant 0 : index
    %41 = vector.load %arg10[%c0_20, %c0_21] : memref<32x64xbf16, #tpu.memory_space<vmem>>, vector<32x64xbf16>
    %cst_22 = arith.constant dense<0.000000e+00> : vector<8x64xf32>
    %42 = tpu.matmul %40, %41, %cst_22 {dimension_numbers = #tpu.dot_dimension_numbers<[1], [0], [0], [1], [0, 0, 1, 1], [], []>} : vector<8x32xbf16>, vector<32x64xbf16>, vector<8x64xf32> -> vector<8x64xf32>
    %c0_23 = arith.constant 0 : index
    %c0_24 = arith.constant 0 : index
    %43 = vector.load %arg11[%c0_23, %c0_24] : memref<1x64xf32, #tpu.memory_space<vmem>>, vector<1x64xf32>
    %44 = vector.broadcast %43 : vector<1x64xf32> to vector<8x64xf32>
    %45 = arith.addf %42, %44 : vector<8x64xf32>
    %cst_25 = arith.constant 0.000000e+00 : f32
    %46 = vector.broadcast %cst_25 : f32 to vector<8x64xf32>
    %47 = arith.maximumf %45, %46 : vector<8x64xf32>
    %48 = arith.truncf %47 : vector<8x64xf32> to vector<8x64xbf16>
    %c0_26 = arith.constant 0 : index
    %c0_27 = arith.constant 0 : index
    %49 = vector.load %arg12[%c0_26, %c0_27] : memref<64x32xbf16, #tpu.memory_space<vmem>>, vector<64x32xbf16>
    %cst_28 = arith.constant dense<0.000000e+00> : vector<8x32xf32>
    %50 = tpu.matmul %48, %49, %cst_28 {dimension_numbers = #tpu.dot_dimension_numbers<[1], [0], [0], [1], [0, 0, 1, 1], [], []>} : vector<8x64xbf16>, vector<64x32xbf16>, vector<8x32xf32> -> vector<8x32xf32>
    %c0_29 = arith.constant 0 : index
    %c0_30 = arith.constant 0 : index
    %51 = vector.load %arg13[%c0_29, %c0_30] : memref<1x32xf32, #tpu.memory_space<vmem>>, vector<1x32xf32>
    %52 = vector.broadcast %51 : vector<1x32xf32> to vector<8x32xf32>
    %53 = arith.addf %50, %52 : vector<8x32xf32>
    %54 = arith.addf %39, %53 : vector<8x32xf32>
    %c0_31 = arith.constant 0 : index
    %c0_32 = arith.constant 0 : index
    %55 = vector.load %arg14[%c0_31, %c0_32] : memref<1x32xf32, #tpu.memory_space<vmem>>, vector<1x32xf32>
    %c0_33 = arith.constant 0 : index
    %c0_34 = arith.constant 0 : index
    %56 = vector.load %arg15[%c0_33, %c0_34] : memref<1x32xf32, #tpu.memory_space<vmem>>, vector<1x32xf32>
    %cst_35 = arith.constant dense<0.000000e+00> : vector<8xf32>
    %57 = vector.multi_reduction <add>, %54, %cst_35 [1] : vector<8x32xf32> to vector<8xf32>
    %58 = vector.shape_cast %57 : vector<8xf32> to vector<8x1xf32>
    %cst_36 = arith.constant 3.200000e+01 : f32
    %59 = vector.broadcast %cst_36 : f32 to vector<8x1xf32>
    %60 = arith.divf %58, %59 : vector<8x1xf32>
    %61 = vector.broadcast %60 : vector<8x1xf32> to vector<8x32xf32>
    %62 = arith.subf %54, %61 : vector<8x32xf32>
    %63 = arith.mulf %62, %62 : vector<8x32xf32>
    %cst_37 = arith.constant dense<0.000000e+00> : vector<8xf32>
    %64 = vector.multi_reduction <add>, %63, %cst_37 [1] : vector<8x32xf32> to vector<8xf32>
    %65 = vector.shape_cast %64 : vector<8xf32> to vector<8x1xf32>
    %cst_38 = arith.constant 3.200000e+01 : f32
    %66 = vector.broadcast %cst_38 : f32 to vector<8x1xf32>
    %67 = arith.divf %65, %66 : vector<8x1xf32>
    %68 = vector.broadcast %60 : vector<8x1xf32> to vector<8x32xf32>
    %69 = arith.subf %54, %68 : vector<8x32xf32>
    %cst_39 = arith.constant 9.99999974E-6 : f32
    %70 = vector.broadcast %cst_39 : f32 to vector<8x1xf32>
    %71 = arith.addf %67, %70 : vector<8x1xf32>
    %72 = math.rsqrt %71 : vector<8x1xf32>
    %73 = vector.broadcast %72 : vector<8x1xf32> to vector<8x32xf32>
    %74 = arith.mulf %69, %73 : vector<8x32xf32>
    %75 = vector.broadcast %55 : vector<1x32xf32> to vector<8x32xf32>
    %76 = arith.mulf %74, %75 : vector<8x32xf32>
    %77 = vector.broadcast %56 : vector<1x32xf32> to vector<8x32xf32>
    %78 = arith.addf %76, %77 : vector<8x32xf32>
    %79 = arith.truncf %78 : vector<8x32xf32> to vector<8x32xbf16>
    %c0_40 = arith.constant 0 : index
    %c0_41 = arith.constant 0 : index
    %c0_42 = arith.constant 0 : index
    %80 = vector.load %arg18[%c0_40, %c0_41, %c0_42] : memref<1x8x32xbf16, #tpu.memory_space<vmem>>, vector<1x8x32xbf16>
    %81 = vector.shape_cast %80 : vector<1x8x32xbf16> to vector<8x32xbf16>
    %82 = vector.shape_cast %79 : vector<8x32xbf16> to vector<1x8x32xbf16>
    tpu.vector_store %arg18[%c0_40, %c0_41, %c0_42], %82 {strides = array<i32>} : memref<1x8x32xbf16, #tpu.memory_space<vmem>>, vector<1x8x32xbf16>,
    return
  }
  func.func @transform_0(%arg0: i32, %arg1: i32) -> (i32, i32, i32) {
    %c0_i32 = arith.constant 0 : i32
    %c0_i32_0 = arith.constant 0 : i32
    return %arg0, %arg1, %c0_i32 : i32, i32, i32
  }
  func.func @transform_1(%arg0: i32, %arg1: i32) -> (i32, i32, i32, i32) {
    %c0_i32 = arith.constant 0 : i32
    %c0_i32_0 = arith.constant 0 : i32
    %c0_i32_1 = arith.constant 0 : i32
    return %arg0, %c0_i32, %arg1, %c0_i32_0 : i32, i32, i32, i32
  }
  func.func @transform_2(%arg0: i32, %arg1: i32) -> (i32, i32, i32, i32) {
    %c0_i32 = arith.constant 0 : i32
    %c0_i32_0 = arith.constant 0 : i32
    %c0_i32_1 = arith.constant 0 : i32
    %c0_i32_2 = arith.constant 0 : i32
    return %arg0, %c0_i32, %c0_i32_0, %c0_i32_1 : i32, i32, i32, i32
  }
  func.func @transform_3(%arg0: i32, %arg1: i32) -> (i32, i32, i32, i32) {
    %c0_i32 = arith.constant 0 : i32
    %c0_i32_0 = arith.constant 0 : i32
    %c0_i32_1 = arith.constant 0 : i32
    %c0_i32_2 = arith.constant 0 : i32
    return %arg0, %c0_i32, %c0_i32_0, %c0_i32_1 : i32, i32, i32, i32
  }
  func.func @transform_4(%arg0: i32, %arg1: i32) -> (i32, i32, i32) {
    %c0_i32 = arith.constant 0 : i32
    %c0_i32_0 = arith.constant 0 : i32
    %c0_i32_1 = arith.constant 0 : i32
    %c0_i32_2 = arith.constant 0 : i32
    return %c0_i32, %c0_i32_0, %c0_i32_1 : i32, i32, i32
  }
  func.func @transform_5(%arg0: i32, %arg1: i32) -> (i32, i32) {
    %c0_i32 = arith.constant 0 : i32
    %c0_i32_0 = arith.constant 0 : i32
    %c0_i32_1 = arith.constant 0 : i32
    return %c0_i32, %c0_i32_0 : i32, i32
  }
  func.func @transform_6(%arg0: i32, %arg1: i32) -> (i32, i32) {
    %c0_i32 = arith.constant 0 : i32
    %c0_i32_0 = arith.constant 0 : i32
    %c0_i32_1 = arith.constant 0 : i32
    return %c0_i32, %c0_i32_0 : i32, i32
  }
  func.func @transform_7(%arg0: i32, %arg1: i32) -> (i32, i32) {
    %c0_i32 = arith.constant 0 : i32
    %c0_i32_0 = arith.constant 0 : i32
    %c0_i32_1 = arith.constant 0 : i32
    return %c0_i32, %c0_i32_0 : i32, i32
  }
  func.func @transform_8(%arg0: i32, %arg1: i32) -> (i32, i32) {
    %c0_i32 = arith.constant 0 : i32
    %c0_i32_0 = arith.constant 0 : i32
    %c0_i32_1 = arith.constant 0 : i32
    return %c0_i32, %c0_i32_0 : i32, i32
  }
  func.func @transform_9(%arg0: i32, %arg1: i32) -> (i32, i32) {
    %c0_i32 = arith.constant 0 : i32
    %c0_i32_0 = arith.constant 0 : i32
    %c0_i32_1 = arith.constant 0 : i32
    return %c0_i32, %c0_i32_0 : i32, i32
  }
  func.func @transform_10(%arg0: i32, %arg1: i32) -> (i32, i32) {
    %c0_i32 = arith.constant 0 : i32
    %c0_i32_0 = arith.constant 0 : i32
    %c0_i32_1 = arith.constant 0 : i32
    return %c0_i32, %c0_i32_0 : i32, i32
  }
  func.func @transform_11(%arg0: i32, %arg1: i32) -> (i32, i32) {
    %c0_i32 = arith.constant 0 : i32
    %c0_i32_0 = arith.constant 0 : i32
    %c0_i32_1 = arith.constant 0 : i32
    return %c0_i32, %c0_i32_0 : i32, i32
  }
  func.func @transform_12(%arg0: i32, %arg1: i32) -> (i32, i32) {
    %c0_i32 = arith.constant 0 : i32
    %c0_i32_0 = arith.constant 0 : i32
    %c0_i32_1 = arith.constant 0 : i32
    return %c0_i32, %c0_i32_0 : i32, i32
  }
  func.func @transform_13(%arg0: i32, %arg1: i32) -> (i32, i32) {
    %c0_i32 = arith.constant 0 : i32
    %c0_i32_0 = arith.constant 0 : i32
    %c0_i32_1 = arith.constant 0 : i32
    return %c0_i32, %c0_i32_0 : i32, i32
  }
  func.func @transform_14(%arg0: i32, %arg1: i32) -> (i32, i32) {
    %c0_i32 = arith.constant 0 : i32
    %c0_i32_0 = arith.constant 0 : i32
    %c0_i32_1 = arith.constant 0 : i32
    return %c0_i32, %c0_i32_0 : i32, i32
  }
  func.func @transform_15(%arg0: i32, %arg1: i32) -> (i32, i32) {
    %c0_i32 = arith.constant 0 : i32
    %c0_i32_0 = arith.constant 0 : i32
    %c0_i32_1 = arith.constant 0 : i32
    return %c0_i32, %c0_i32_0 : i32, i32
  }
  func.func @transform_16(%arg0: i32, %arg1: i32) -> (i32, i32, i32) {
    %c0_i32 = arith.constant 0 : i32
    %c0_i32_0 = arith.constant 0 : i32
    return %arg0, %arg1, %c0_i32 : i32, i32, i32
  }
}

</mosaic_0001>

<llo_original>
// kernel: tpu_custom_call.1
$region0: #{tpu_custom_call.1}
  #allocation0 [shape = 'u32[]', space=smem, size = 0x4, offset = 0x4, fixed_abs, tag = 'smem constant byte address 0x4 - core index']
  #allocation1 [shape = 'u32[144,128]{1,0:T(1,128)}', space=vmem, size = 0x12000, scoped, tag = 'internal scratch']
  #allocation2 [shape = 'f32[8,32]{1,0:T(8,128)}', space=vmem, size = 0x1000, scoped, tag = 'scratch operand']
  %s0 = inlined_call_operand.vmem [shape: f32[2,16,32], index: 0, kind: input, shape index: {}]
  %s1 = inlined_call_operand.vmem [shape: bf16[2,4,16,8], index: 1, kind: input, shape index: {}]
  %s2 = inlined_call_operand.vmem [shape: bf16[2,4,8,16], index: 2, kind: input, shape index: {}]
  %s3 = inlined_call_operand.vmem [shape: bf16[2,4,16,8], index: 3, kind: input, shape index: {}]
  %s4 = inlined_call_operand.vmem [shape: bf16[4,8,32], index: 4, kind: input, shape index: {}]
  %s5 = inlined_call_operand.vmem [shape: f32[1,32], index: 5, kind: input, shape index: {}]
  %s6 = inlined_call_operand.vmem [shape: f32[1,32], index: 6, kind: input, shape index: {}]
  %s7 = inlined_call_operand.vmem [shape: f32[1,32], index: 7, kind: input, shape index: {}]
  %s8 = inlined_call_operand.vmem [shape: bf16[32,64], index: 8, kind: input, shape index: {}]
  %s9 = inlined_call_operand.vmem [shape: f32[1,64], index: 9, kind: input, shape index: {}]
  %s10 = inlined_call_operand.vmem [shape: bf16[64,32], index: 10, kind: input, shape index: {}]
  %s11 = inlined_call_operand.vmem [shape: f32[1,32], index: 11, kind: input, shape index: {}]
  %s12 = inlined_call_operand.vmem [shape: f32[1,32], index: 12, kind: input, shape index: {}]
  %s13 = inlined_call_operand.vmem [shape: f32[1,32], index: 13, kind: input, shape index: {}]
  %s14 = inlined_call_operand.vmem [shape: f32[1,32], index: 14, kind: input, shape index: {}]
  %s15 = inlined_call_operand.vmem [shape: f32[1,32], index: 15, kind: input, shape index: {}]
  %s16 = inlined_call_operand.hbm [shape: bf16[2,16,32], index: 16, kind: output, shape index: {}]
  %s17 = sld [smem:[#allocation0]]
  $region145: #{tpu_custom_call.1} parent=0
    _
  %s19 = ssub.s32 1, %s17
  %s20 = scalar_select 0, %s19, %s17
  $region1: #{tpu_custom_call.1} parent=0
    #allocation3 [shape = 'u8[16384]{0}', space=vmem, size = 0x4000, scoped, tag = 'input window, operand 1']
    #allocation4 [shape = 'u8[4096]{0}', space=vmem, size = 0x1000, scoped, tag = 'output window, operand 0']
    #allocation5 [shape = 's32[2]{0}', space=sflag, size = 0x8, scoped, tag = 'scoped memory for tpu_custom_call.1']
    %21 = vsyncpa [#allocation5], 0
    %s22 = scalar_lea.sflag [#allocation5], 1
    %23 = vsyncpa %s22, 0
    loop: start=0, step=1, limit=6
    $region2: #{tpu_custom_call.1} parent=1 // loop_pre_header
      _
    $region3: #{tpu_custom_call.1} parent=1 // loop_header
      %s25 = sphi 0, %s29
      %p26 = scmp.ge.s32.totalorder %s25, 6
      %s32 = sphi 0, %s44
      %s33 = sphi 0, %s40
      %s34 = sphi 0, %s32
      %s35 = sphi 0, %s33
      %s36 = sphi 0, %s34
      %s37 = sphi 0, %s35
      %s49 = sphi 0, %s51
      %s52 = sphi 0, %s49
      %s53 = sphi 0, %s52
      %s69 = sphi 0, %s53
      %s77 = sphi 0, %s79
      %s80 = sphi 0, %s77
      %s81 = sphi 0, %s80
      %s97 = sphi 0, %s81
      %s103 = sphi 0, %s105
      %s106 = sphi 0, %s103
      %s107 = sphi 0, %s106
      %s123 = sphi 0, %s107
      %s129 = sphi 0, %s131
      %s132 = sphi 0, %s129
      %s133 = sphi 0, %s132
      %s149 = sphi 0, %s133
      %s153 = sphi 0, %s153
      %s155 = sphi 0, %s153
      %s156 = sphi 0, %s155
      %s170 = sphi 0, %s156
      %s174 = sphi 0, %s174
      %s176 = sphi 0, %s174
      %s177 = sphi 0, %s176
      %s191 = sphi 0, %s177
      %s195 = sphi 0, %s195
      %s197 = sphi 0, %s195
      %s198 = sphi 0, %s197
      %s212 = sphi 0, %s198
      %s216 = sphi 0, %s216
      %s218 = sphi 0, %s216
      %s219 = sphi 0, %s218
      %s233 = sphi 0, %s219
      %s237 = sphi 0, %s237
      %s239 = sphi 0, %s237
      %s240 = sphi 0, %s239
      %s254 = sphi 0, %s240
      %s258 = sphi 0, %s258
      %s260 = sphi 0, %s258
      %s261 = sphi 0, %s260
      %s275 = sphi 0, %s261
      %s279 = sphi 0, %s279
      %s281 = sphi 0, %s279
      %s282 = sphi 0, %s281
      %s296 = sphi 0, %s282
      %s300 = sphi 0, %s300
      %s302 = sphi 0, %s300
      %s303 = sphi 0, %s302
      %s317 = sphi 0, %s303
      %s321 = sphi 0, %s321
      %s323 = sphi 0, %s321
      %s324 = sphi 0, %s323
      %s338 = sphi 0, %s324
      %s342 = sphi 0, %s342
      %s344 = sphi 0, %s342
      %s345 = sphi 0, %s344
      %s359 = sphi 0, %s345
      %s363 = sphi 0, %s363
      %s365 = sphi 0, %s363
      %s366 = sphi 0, %s365
      %s380 = sphi 0, %s366
      %s384 = sphi 0, %s384
      %s386 = sphi 0, %s384
      %s387 = sphi 0, %s386
      %s401 = sphi 0, %s387
      %s409 = sphi 0, %s411
      %s412 = sphi 0, %s409
      %s413 = sphi 0, %s412
      %s429 = sphi 0, %s413
    $region4: #{tpu_custom_call.1} parent=1 // loop_header_branch
      %28 = sbr.rel (%p26) target = $region8
    $region5: #{tpu_custom_call.1} parent=1 // loop_body
      %s30 = ssub.s32 %s25, 1
      %s31 = ssub.s32 %s25, 2
      %s38 = sadd.s32 1, %s33
      %p39 = scmp.ge.s32.totalorder %s38, 2
      %s40 = scalar_select %p39, 0, %s38
      %s41 = sadd.s32 1, %s32
      %s42 = scalar_select %p39, %s41, %s32
      %p43 = scmp.ge.s32.totalorder %s42, 2
      %s44 = scalar_select %p43, 0, %s42
      %s45 = ssub.s32 %s32, %s44
      %s46 = ssub.s32 %s33, %s40
      %s47 = sor.u32 %s45, %s46
      %p48 = scmp.eq.s32.totalorder %s47, 0
      %s50 = sadd.s32 %s49, 1
      %s51 = scalar_select %p48, %s49, %s50
      %p54 = pneg %p48
      %p55 = scmp.eq.s32.totalorder %s25, 3
      %p56 = por %p54, %p55
      %p57 = scmp.ne.s32.totalorder %s49, %s52
      %p58 = scmp.eq.s32.totalorder %s25, 0
      %p59 = por %p57, %p58
      %p60 = scmp.ne.s32.totalorder %s49, %s52
      %p61 = scmp.eq.s32.totalorder %s30, 3
      %p62 = por %p60, %p61
      %p63 = scmp.ne.s32.totalorder %s52, %s53
      %p64 = scmp.eq.s32.totalorder %s30, 0
      %p65 = por %p63, %p64
      %p66 = scmp.ne.s32.totalorder %s52, %s53
      %p67 = scmp.eq.s32.totalorder %s31, 3
      %p68 = por %p66, %p67
      %p70 = scmp.ne.s32.totalorder %s53, %s69
      %p71 = scmp.eq.s32.totalorder %s31, 0
      %p72 = por %p70, %p71
      %s73 = ssub.s32 %s32, %s44
      %s74 = ssub.s32 %s33, %s40
      %s75 = sor.u32 %s73, %s74
      %p76 = scmp.eq.s32.totalorder %s75, 0
      %s78 = sadd.s32 %s77, 1
      %s79 = scalar_select %p76, %s77, %s78
      %p82 = pneg %p76
      %p83 = scmp.eq.s32.totalorder %s25, 3
      %p84 = por %p82, %p83
      %p85 = scmp.ne.s32.totalorder %s77, %s80
      %p86 = scmp.eq.s32.totalorder %s25, 0
      %p87 = por %p85, %p86
      %p88 = scmp.ne.s32.totalorder %s77, %s80
      %p89 = scmp.eq.s32.totalorder %s30, 3
      %p90 = por %p88, %p89
      %p91 = scmp.ne.s32.totalorder %s80, %s81
      %p92 = scmp.eq.s32.totalorder %s30, 0
      %p93 = por %p91, %p92
      %p94 = scmp.ne.s32.totalorder %s80, %s81
      %p95 = scmp.eq.s32.totalorder %s31, 3
      %p96 = por %p94, %p95
      %p98 = scmp.ne.s32.totalorder %s81, %s97
      %p99 = scmp.eq.s32.totalorder %s31, 0
      %p100 = por %p98, %p99
      %s101 = ssub.s32 %s32, %s44
      %p102 = scmp.eq.s32.totalorder %s101, 0
      %s104 = sadd.s32 %s103, 1
      %s105 = scalar_select %p102, %s103, %s104
      %p108 = pneg %p102
      %p109 = scmp.eq.s32.totalorder %s25, 3
      %p110 = por %p108, %p109
      %p111 = scmp.ne.s32.totalorder %s103, %s106
      %p112 = scmp.eq.s32.totalorder %s25, 0
      %p113 = por %p111, %p112
      %p114 = scmp.ne.s32.totalorder %s103, %s106
      %p115 = scmp.eq.s32.totalorder %s30, 3
      %p116 = por %p114, %p115
      %p117 = scmp.ne.s32.totalorder %s106, %s107
      %p118 = scmp.eq.s32.totalorder %s30, 0
      %p119 = por %p117, %p118
      %p120 = scmp.ne.s32.totalorder %s106, %s107
      %p121 = scmp.eq.s32.totalorder %s31, 3
      %p122 = por %p120, %p121
      %p124 = scmp.ne.s32.totalorder %s107, %s123
      %p125 = scmp.eq.s32.totalorder %s31, 0
      %p126 = por %p124, %p125
      %s127 = ssub.s32 %s32, %s44
      %p128 = scmp.eq.s32.totalorder %s127, 0
      %s130 = sadd.s32 %s129, 1
      %s131 = scalar_select %p128, %s129, %s130
      %p134 = pneg %p128
      %p135 = scmp.eq.s32.totalorder %s25, 3
      %p136 = por %p134, %p135
      %p137 = scmp.ne.s32.totalorder %s129, %s132
      %p138 = scmp.eq.s32.totalorder %s25, 0
      %p139 = por %p137, %p138
      %p140 = scmp.ne.s32.totalorder %s129, %s132
      %p141 = scmp.eq.s32.totalorder %s30, 3
      %p142 = por %p140, %p141
      %p143 = scmp.ne.s32.totalorder %s132, %s133
      %p144 = scmp.eq.s32.totalorder %s30, 0
      %p145 = por %p143, %p144
      %p146 = scmp.ne.s32.totalorder %s132, %s133
      %p147 = scmp.eq.s32.totalorder %s31, 3
      %p148 = por %p146, %p147
      %p150 = scmp.ne.s32.totalorder %s133, %s149
      %p151 = scmp.eq.s32.totalorder %s31, 0
      %p152 = por %p150, %p151
      %s154 = sadd.s32 %s153, 1
      %p157 = scmp.eq.s32.totalorder %s25, 3
      %p158 = scmp.ne.s32.totalorder %s153, %s155
      %p159 = scmp.eq.s32.totalorder %s25, 0
      %p160 = por %p158, %p159
      %p161 = scmp.ne.s32.totalorder %s153, %s155
      %p162 = scmp.eq.s32.totalorder %s30, 3
      %p163 = por %p161, %p162
      %p164 = scmp.ne.s32.totalorder %s155, %s156
      %p165 = scmp.eq.s32.totalorder %s30, 0
      %p166 = por %p164, %p165
      %p167 = scmp.ne.s32.totalorder %s155, %s156
      %p168 = scmp.eq.s32.totalorder %s31, 3
      %p169 = por %p167, %p168
      %p171 = scmp.ne.s32.totalorder %s156, %s170
      %p172 = scmp.eq.s32.totalorder %s31, 0
      %p173 = por %p171, %p172
      %s175 = sadd.s32 %s174, 1
      %p178 = scmp.eq.s32.totalorder %s25, 3
      %p179 = scmp.ne.s32.totalorder %s174, %s176
      %p180 = scmp.eq.s32.totalorder %s25, 0
      %p181 = por %p179, %p180
      %p182 = scmp.ne.s32.totalorder %s174, %s176
      %p183 = scmp.eq.s32.totalorder %s30, 3
      %p184 = por %p182, %p183
      %p185 = scmp.ne.s32.totalorder %s176, %s177
      %p186 = scmp.eq.s32.totalorder %s30, 0
      %p187 = por %p185, %p186
      %p188 = scmp.ne.s32.totalorder %s176, %s177
      %p189 = scmp.eq.s32.totalorder %s31, 3
      %p190 = por %p188, %p189
      %p192 = scmp.ne.s32.totalorder %s177, %s191
      %p193 = scmp.eq.s32.totalorder %s31, 0
      %p194 = por %p192, %p193
      %s196 = sadd.s32 %s195, 1
      %p199 = scmp.eq.s32.totalorder %s25, 3
      %p200 = scmp.ne.s32.totalorder %s195, %s197
      %p201 = scmp.eq.s32.totalorder %s25, 0
      %p202 = por %p200, %p201
      %p203 = scmp.ne.s32.totalorder %s195, %s197
      %p204 = scmp.eq.s32.totalorder %s30, 3
      %p205 = por %p203, %p204
      %p206 = scmp.ne.s32.totalorder %s197, %s198
      %p207 = scmp.eq.s32.totalorder %s30, 0
      %p208 = por %p206, %p207
      %p209 = scmp.ne.s32.totalorder %s197, %s198
      %p210 = scmp.eq.s32.totalorder %s31, 3
      %p211 = por %p209, %p210
      %p213 = scmp.ne.s32.totalorder %s198, %s212
      %p214 = scmp.eq.s32.totalorder %s31, 0
      %p215 = por %p213, %p214
      %s217 = sadd.s32 %s216, 1
      %p220 = scmp.eq.s32.totalorder %s25, 3
      %p221 = scmp.ne.s32.totalorder %s216, %s218
      %p222 = scmp.eq.s32.totalorder %s25, 0
      %p223 = por %p221, %p222
      %p224 = scmp.ne.s32.totalorder %s216, %s218
      %p225 = scmp.eq.s32.totalorder %s30, 3
      %p226 = por %p224, %p225
      %p227 = scmp.ne.s32.totalorder %s218, %s219
      %p228 = scmp.eq.s32.totalorder %s30, 0
      %p229 = por %p227, %p228
      %p230 = scmp.ne.s32.totalorder %s218, %s219
      %p231 = scmp.eq.s32.totalorder %s31, 3
      %p232 = por %p230, %p231
      %p234 = scmp.ne.s32.totalorder %s219, %s233
      %p235 = scmp.eq.s32.totalorder %s31, 0
      %p236 = por %p234, %p235
      %s238 = sadd.s32 %s237, 1
      %p241 = scmp.eq.s32.totalorder %s25, 3
      %p242 = scmp.ne.s32.totalorder %s237, %s239
      %p243 = scmp.eq.s32.totalorder %s25, 0
      %p244 = por %p242, %p243
      %p245 = scmp.ne.s32.totalorder %s237, %s239
      %p246 = scmp.eq.s32.totalorder %s30, 3
      %p247 = por %p245, %p246
      %p248 = scmp.ne.s32.totalorder %s239, %s240
      %p249 = scmp.eq.s32.totalorder %s30, 0
      %p250 = por %p248, %p249
      %p251 = scmp.ne.s32.totalorder %s239, %s240
      %p252 = scmp.eq.s32.totalorder %s31, 3
      %p253 = por %p251, %p252
      %p255 = scmp.ne.s32.totalorder %s240, %s254
      %p256 = scmp.eq.s32.totalorder %s31, 0
      %p257 = por %p255, %p256
      %s259 = sadd.s32 %s258, 1
      %p262 = scmp.eq.s32.totalorder %s25, 3
      %p263 = scmp.ne.s32.totalorder %s258, %s260
      %p264 = scmp.eq.s32.totalorder %s25, 0
      %p265 = por %p263, %p264
      %p266 = scmp.ne.s32.totalorder %s258, %s260
      %p267 = scmp.eq.s32.totalorder %s30, 3
      %p268 = por %p266, %p267
      %p269 = scmp.ne.s32.totalorder %s260, %s261
      %p270 = scmp.eq.s32.totalorder %s30, 0
      %p271 = por %p269, %p270
      %p272 = scmp.ne.s32.totalorder %s260, %s261
      %p273 = scmp.eq.s32.totalorder %s31, 3
      %p274 = por %p272, %p273
      %p276 = scmp.ne.s32.totalorder %s261, %s275
      %p277 = scmp.eq.s32.totalorder %s31, 0
      %p278 = por %p276, %p277
      %s280 = sadd.s32 %s279, 1
      %p283 = scmp.eq.s32.totalorder %s25, 3
      %p284 = scmp.ne.s32.totalorder %s279, %s281
      %p285 = scmp.eq.s32.totalorder %s25, 0
      %p286 = por %p284, %p285
      %p287 = scmp.ne.s32.totalorder %s279, %s281
      %p288 = scmp.eq.s32.totalorder %s30, 3
      %p289 = por %p287, %p288
      %p290 = scmp.ne.s32.totalorder %s281, %s282
      %p291 = scmp.eq.s32.totalorder %s30, 0
      %p292 = por %p290, %p291
      %p293 = scmp.ne.s32.totalorder %s281, %s282
      %p294 = scmp.eq.s32.totalorder %s31, 3
      %p295 = por %p293, %p294
      %p297 = scmp.ne.s32.totalorder %s282, %s296
      %p298 = scmp.eq.s32.totalorder %s31, 0
      %p299 = por %p297, %p298
      %s301 = sadd.s32 %s300, 1
      %p304 = scmp.eq.s32.totalorder %s25, 3
      %p305 = scmp.ne.s32.totalorder %s300, %s302
      %p306 = scmp.eq.s32.totalorder %s25, 0
      %p307 = por %p305, %p306
      %p308 = scmp.ne.s32.totalorder %s300, %s302
      %p309 = scmp.eq.s32.totalorder %s30, 3
      %p310 = por %p308, %p309
      %p311 = scmp.ne.s32.totalorder %s302, %s303
      %p312 = scmp.eq.s32.totalorder %s30, 0
      %p313 = por %p311, %p312
      %p314 = scmp.ne.s32.totalorder %s302, %s303
      %p315 = scmp.eq.s32.totalorder %s31, 3
      %p316 = por %p314, %p315
      %p318 = scmp.ne.s32.totalorder %s303, %s317
      %p319 = scmp.eq.s32.totalorder %s31, 0
      %p320 = por %p318, %p319
      %s322 = sadd.s32 %s321, 1
      %p325 = scmp.eq.s32.totalorder %s25, 3
      %p326 = scmp.ne.s32.totalorder %s321, %s323
      %p327 = scmp.eq.s32.totalorder %s25, 0
      %p328 = por %p326, %p327
      %p329 = scmp.ne.s32.totalorder %s321, %s323
      %p330 = scmp.eq.s32.totalorder %s30, 3
      %p331 = por %p329, %p330
      %p332 = scmp.ne.s32.totalorder %s323, %s324
      %p333 = scmp.eq.s32.totalorder %s30, 0
      %p334 = por %p332, %p333
      %p335 = scmp.ne.s32.totalorder %s323, %s324
      %p336 = scmp.eq.s32.totalorder %s31, 3
      %p337 = por %p335, %p336
      %p339 = scmp.ne.s32.totalorder %s324, %s338
      %p340 = scmp.eq.s32.totalorder %s31, 0
      %p341 = por %p339, %p340
      %s343 = sadd.s32 %s342, 1
      %p346 = scmp.eq.s32.totalorder %s25, 3
      %p347 = scmp.ne.s32.totalorder %s342, %s344
      %p348 = scmp.eq.s32.totalorder %s25, 0
      %p349 = por %p347, %p348
      %p350 = scmp.ne.s32.totalorder %s342, %s344
      %p351 = scmp.eq.s32.totalorder %s30, 3
      %p352 = por %p350, %p351
      %p353 = scmp.ne.s32.totalorder %s344, %s345
      %p354 = scmp.eq.s32.totalorder %s30, 0
      %p355 = por %p353, %p354
      %p356 = scmp.ne.s32.totalorder %s344, %s345
      %p357 = scmp.eq.s32.totalorder %s31, 3
      %p358 = por %p356, %p357
      %p360 = scmp.ne.s32.totalorder %s345, %s359
      %p361 = scmp.eq.s32.totalorder %s31, 0
      %p362 = por %p360, %p361
      %s364 = sadd.s32 %s363, 1
      %p367 = scmp.eq.s32.totalorder %s25, 3
      %p368 = scmp.ne.s32.totalorder %s363, %s365
      %p369 = scmp.eq.s32.totalorder %s25, 0
      %p370 = por %p368, %p369
      %p371 = scmp.ne.s32.totalorder %s363, %s365
      %p372 = scmp.eq.s32.totalorder %s30, 3
      %p373 = por %p371, %p372
      %p374 = scmp.ne.s32.totalorder %s365, %s366
      %p375 = scmp.eq.s32.totalorder %s30, 0
      %p376 = por %p374, %p375
      %p377 = scmp.ne.s32.totalorder %s365, %s366
      %p378 = scmp.eq.s32.totalorder %s31, 3
      %p379 = por %p377, %p378
      %p381 = scmp.ne.s32.totalorder %s366, %s380
      %p382 = scmp.eq.s32.totalorder %s31, 0
      %p383 = por %p381, %p382
      %s385 = sadd.s32 %s384, 1
      %p388 = scmp.eq.s32.totalorder %s25, 3
      %p389 = scmp.ne.s32.totalorder %s384, %s386
      %p390 = scmp.eq.s32.totalorder %s25, 0
      %p391 = por %p389, %p390
      %p392 = scmp.ne.s32.totalorder %s384, %s386
      %p393 = scmp.eq.s32.totalorder %s30, 3
      %p394 = por %p392, %p393
      %p395 = scmp.ne.s32.totalorder %s386, %s387
      %p396 = scmp.eq.s32.totalorder %s30, 0
      %p397 = por %p395, %p396
      %p398 = scmp.ne.s32.totalorder %s386, %s387
      %p399 = scmp.eq.s32.totalorder %s31, 3
      %p400 = por %p398, %p399
      %p402 = scmp.ne.s32.totalorder %s387, %s401
      %p403 = scmp.eq.s32.totalorder %s31, 0
      %p404 = por %p402, %p403
      %s405 = ssub.s32 %s32, %s44
      %s406 = ssub.s32 %s33, %s40
      %s407 = sor.u32 %s405, %s406
      %p408 = scmp.eq.s32.totalorder %s407, 0
      %s410 = sadd.s32 %s409, 1
      %s411 = scalar_select %p408, %s409, %s410
      %p414 = pneg %p408
      %p415 = scmp.eq.s32.totalorder %s25, 3
      %p416 = por %p414, %p415
      %p417 = scmp.ne.s32.totalorder %s409, %s412
      %p418 = scmp.eq.s32.totalorder %s25, 0
      %p419 = por %p417, %p418
      %p420 = scmp.ne.s32.totalorder %s409, %s412
      %p421 = scmp.eq.s32.totalorder %s30, 3
      %p422 = por %p420, %p421
      %p423 = scmp.ne.s32.totalorder %s412, %s413
      %p424 = scmp.eq.s32.totalorder %s30, 0
      %p425 = por %p423, %p424
      %p426 = scmp.ne.s32.totalorder %s412, %s413
      %p427 = scmp.eq.s32.totalorder %s31, 3
      %p428 = por %p426, %p427
      %p430 = scmp.ne.s32.totalorder %s413, %s429
      %p431 = scmp.eq.s32.totalorder %s31, 0
      %p432 = por %p430, %p431
      %p433 = scmp.le.s32.totalorder 1, %s25
      %p434 = scmp.lt.s32.totalorder %s25, 5
      %p435 = pnand %p433, %p434
      %p436 = pneg %p435
      // Predicated region
      $region9: #{tpu_custom_call.1} parent=5 // pred_check
        _
      $region10: #{tpu_custom_call.1} parent=5 // pred_check_branch
        %438 = sbr.rel (%p435) target = $region12
      $region11: #{tpu_custom_call.1} parent=5 // pred_region
        %s439 = ssub.s32 %s25, 1
        // Predicated region
        $region13: #{tpu_custom_call.1} parent=11 // pred_check
          %p440 = pneg %p166
        $region14: #{tpu_custom_call.1} parent=11 // pred_check_branch
          %442 = sbr.rel (%p440) target = $region16
        $region15: #{tpu_custom_call.1} parent=11 // pred_region
          _
        $region16: #{tpu_custom_call.1} parent=11 // pred_fallthru
          _
        // Predicated region
        $region17: #{tpu_custom_call.1} parent=11 // pred_check
          %p443 = pneg %p187
        $region18: #{tpu_custom_call.1} parent=11 // pred_check_branch
          %445 = sbr.rel (%p443) target = $region20
        $region19: #{tpu_custom_call.1} parent=11 // pred_region
          _
        $region20: #{tpu_custom_call.1} parent=11 // pred_fallthru
          _
        // Predicated region
        $region21: #{tpu_custom_call.1} parent=11 // pred_check
          %p446 = pneg %p208
        $region22: #{tpu_custom_call.1} parent=11 // pred_check_branch
          %448 = sbr.rel (%p446) target = $region24
        $region23: #{tpu_custom_call.1} parent=11 // pred_region
          _
        $region24: #{tpu_custom_call.1} parent=11 // pred_fallthru
          _
        // Predicated region
        $region25: #{tpu_custom_call.1} parent=11 // pred_check
          %p449 = pneg %p229
        $region26: #{tpu_custom_call.1} parent=11 // pred_check_branch
          %451 = sbr.rel (%p449) target = $region28
        $region27: #{tpu_custom_call.1} parent=11 // pred_region
          _
        $region28: #{tpu_custom_call.1} parent=11 // pred_fallthru
          _
        // Predicated region
        $region29: #{tpu_custom_call.1} parent=11 // pred_check
          %p452 = pneg %p250
        $region30: #{tpu_custom_call.1} parent=11 // pred_check_branch
          %454 = sbr.rel (%p452) target = $region32
        $region31: #{tpu_custom_call.1} parent=11 // pred_region
          _
        $region32: #{tpu_custom_call.1} parent=11 // pred_fallthru
          _
        // Predicated region
        $region33: #{tpu_custom_call.1} parent=11 // pred_check
          %p455 = pneg %p271
        $region34: #{tpu_custom_call.1} parent=11 // pred_check_branch
          %457 = sbr.rel (%p455) target = $region36
        $region35: #{tpu_custom_call.1} parent=11 // pred_region
          _
        $region36: #{tpu_custom_call.1} parent=11 // pred_fallthru
          _
        // Predicated region
        $region37: #{tpu_custom_call.1} parent=11 // pred_check
          %p458 = pneg %p292
        $region38: #{tpu_custom_call.1} parent=11 // pred_check_branch
          %460 = sbr.rel (%p458) target = $region40
        $region39: #{tpu_custom_call.1} parent=11 // pred_region
          _
        $region40: #{tpu_custom_call.1} parent=11 // pred_fallthru
          _
        // Predicated region
        $region41: #{tpu_custom_call.1} parent=11 // pred_check
          %p461 = pneg %p313
        $region42: #{tpu_custom_call.1} parent=11 // pred_check_branch
          %463 = sbr.rel (%p461) target = $region44
        $region43: #{tpu_custom_call.1} parent=11 // pred_region
          _
        $region44: #{tpu_custom_call.1} parent=11 // pred_fallthru
          _
        // Predicated region
        $region45: #{tpu_custom_call.1} parent=11 // pred_check
          %p464 = pneg %p334
        $region46: #{tpu_custom_call.1} parent=11 // pred_check_branch
          %466 = sbr.rel (%p464) target = $region48
        $region47: #{tpu_custom_call.1} parent=11 // pred_region
          _
        $region48: #{tpu_custom_call.1} parent=11 // pred_fallthru
          _
        // Predicated region
        $region49: #{tpu_custom_call.1} parent=11 // pred_check
          %p467 = pneg %p355
        $region50: #{tpu_custom_call.1} parent=11 // pred_check_branch
          %469 = sbr.rel (%p467) target = $region52
        $region51: #{tpu_custom_call.1} parent=11 // pred_region
          _
        $region52: #{tpu_custom_call.1} parent=11 // pred_fallthru
          _
        // Predicated region
        $region53: #{tpu_custom_call.1} parent=11 // pred_check
          %p470 = pneg %p376
        $region54: #{tpu_custom_call.1} parent=11 // pred_check_branch
          %472 = sbr.rel (%p470) target = $region56
        $region55: #{tpu_custom_call.1} parent=11 // pred_region
          _
        $region56: #{tpu_custom_call.1} parent=11 // pred_fallthru
          _
        // Predicated region
        $region57: #{tpu_custom_call.1} parent=11 // pred_check
          %p473 = pneg %p397
        $region58: #{tpu_custom_call.1} parent=11 // pred_check_branch
          %475 = sbr.rel (%p473) target = $region60
        $region59: #{tpu_custom_call.1} parent=11 // pred_region
          _
        $region60: #{tpu_custom_call.1} parent=11 // pred_fallthru
          _
      $region12: #{tpu_custom_call.1} parent=5 // pred_fallthru
        _
      %p476 = scmp.lt.s32.totalorder %s25, 4
      // Predicated region
      $region61: #{tpu_custom_call.1} parent=5 // pred_check
        %p477 = pneg %p476
      $region62: #{tpu_custom_call.1} parent=5 // pred_check_branch
        %479 = sbr.rel (%p477) target = $region64
      $region63: #{tpu_custom_call.1} parent=5 // pred_region
        // Predicated region
        $region65: #{tpu_custom_call.1} parent=63 // pred_check
          %p480 = pneg %p59
        $region66: #{tpu_custom_call.1} parent=63 // pred_check_branch
          %482 = sbr.rel (%p480) target = $region68
        $region67: #{tpu_custom_call.1} parent=63 // pred_region
          %p483 = scmp.lt.s32.totalorder %s32, 1
          %s484 = scalar_select %p483, %s32, 1
          %p485 = scmp.lt.s32.totalorder %s33, 1
          %s486 = scalar_select %p485, %s33, 1
          %s487 = smul.addr %s484, 2
          %s488 = sadd.s32 %s486, %s487
          %s489 = smul.addr %s488, 8
          %s490 = scalar_lea.vmem %s0, %s489
        $region68: #{tpu_custom_call.1} parent=63 // pred_fallthru
          _
        // Predicated region
        $region69: #{tpu_custom_call.1} parent=63 // pred_check
          %p491 = pneg %p87
        $region70: #{tpu_custom_call.1} parent=63 // pred_check_branch
          %493 = sbr.rel (%p491) target = $region72
        $region71: #{tpu_custom_call.1} parent=63 // pred_region
          %s494 = sand.u32 %s77, 1
          %s495 = sand.u32 %s77, 1
          %s496 = smul.addr %s495, 16
          %s497 = scalar_lea.vmem [#allocation3], %s496
          %s498 = smul.addr %s32, 8
          %s499 = sadd.s32 %s33, %s498
          %s500 = smul.addr %s499, 4
          %s501 = scalar_lea.vmem %s1, %s500
          // Predicated region
          $region73: #{tpu_custom_call.1} parent=71 // pred_check
            _
          $region74: #{tpu_custom_call.1} parent=71 // pred_check_branch
            %503 = sbr.rel (0) target = $region76
          $region75: #{tpu_custom_call.1} parent=71 // pred_region
            // Predicated region
            $region77: #{tpu_custom_call.1} parent=75 // pred_check
              _
            $region78: #{tpu_custom_call.1} parent=75 // pred_check_branch
              %505 = sbr.rel target = $region80
            $region79: #{tpu_custom_call.1} parent=75 // pred_region
              // Predicated region
              $region92: #{tpu_custom_call.1} parent=79 // pred_check
                _
              $region93: #{tpu_custom_call.1} parent=79 // pred_check_branch
                %526 = sbr.rel (0) target = $region95
              $region94: #{tpu_custom_call.1} parent=79 // pred_region
                loop: start=0, step=1, limit=1
                $region96: #{tpu_custom_call.1} parent=94 // loop_pre_header
                  _
                $region97: #{tpu_custom_call.1} parent=94 // loop_header
                  %s528 = sphi 0, %s532
                  %p529 = scmp.ge.s32.totalorder %s528, 1
                  %s533 = sphi %s501, %s501
                  %s534 = sphi %s497, %s497
                $region98: #{tpu_custom_call.1} parent=94 // loop_header_branch
                  %531 = sbr.rel (%p529) target = $region102
                $region99: #{tpu_custom_call.1} parent=94 // loop_body
                  _
                $region100: #{tpu_custom_call.1} parent=94 // loop_footer
                  %s532 = sadd.s32 1, %s528
                $region101: #{tpu_custom_call.1} parent=94 // loop_footer_branch
                  %527 = sbr.rel target = $region97
                $region102: #{tpu_custom_call.1} parent=94 // loop_exit
                  _
                loop: start=0, step=1, limit=1
                $region103: #{tpu_custom_call.1} parent=94 // loop_pre_header
                  _
                $region104: #{tpu_custom_call.1} parent=94 // loop_header
                  %s537 = sphi 0, %s541
                  %p538 = scmp.ge.s32.totalorder %s537, 1
                  %s542 = sphi %s501, %s501
                  %s543 = sphi %s497, %s497
                $region105: #{tpu_custom_call.1} parent=94 // loop_header_branch
                  %540 = sbr.rel (%p538) target = $region109
                $region106: #{tpu_custom_call.1} parent=94 // loop_body
                  %v544 = vld [vmem:[%s542] sm:$0xf]
                  %545 = vst [vmem:[%s543] sm:$0xf] %v544
                  %v546 = vld [vmem:[%s542 + $0x8] sm:$0xf]
                  %547 = vst [vmem:[%s543 + $0x4] sm:$0xf] %v546
                  %v548 = vld [vmem:[%s542 + $0x10] sm:$0xf]
                  %549 = vst [vmem:[%s543 + $0x8] sm:$0xf] %v548
                  %v550 = vld [vmem:[%s542 + $0x18] sm:$0xf]
                  %551 = vst [vmem:[%s543 + $0xc] sm:$0xf] %v550
                $region107: #{tpu_custom_call.1} parent=94 // loop_footer
                  %s541 = sadd.s32 1, %s537
                $region108: #{tpu_custom_call.1} parent=94 // loop_footer_branch
                  %536 = sbr.rel target = $region104
                $region109: #{tpu_custom_call.1} parent=94 // loop_exit
                  _
              $region95: #{tpu_custom_call.1} parent=79 // pred_fallthru
                _
            $region80: #{tpu_custom_call.1} parent=75 // pred_fallthru
              _
            // Predicated region
            $region81: #{tpu_custom_call.1} parent=75 // pred_check
              _
            $region82: #{tpu_custom_call.1} parent=75 // pred_check_branch
              %507 = sbr.rel (0) target = $region84
            $region83: #{tpu_custom_call.1} parent=75 // pred_region
              loop: start=0, step=1, limit=1
              $region85: #{tpu_custom_call.1} parent=83 // loop_pre_header
                _
              $region86: #{tpu_custom_call.1} parent=83 // loop_header
                %s510 = sphi 0, %s514
                %p511 = scmp.ge.s32.totalorder %s510, 1
                %s515 = sphi %s501, %s501
                %s516 = sphi %s497, %s497
              $region87: #{tpu_custom_call.1} parent=83 // loop_header_branch
                %513 = sbr.rel (%p511) target = $region91
              $region88: #{tpu_custom_call.1} parent=83 // loop_body
                %v517 = vld [vmem:[%s515] sm:$0xf]
                %518 = vst [vmem:[%s516] sm:$0xf] %v517
                %v519 = vld [vmem:[%s515 + $0x8] sm:$0xf]
                %520 = vst [vmem:[%s516 + $0x4] sm:$0xf] %v519
                %v521 = vld [vmem:[%s515 + $0x10] sm:$0xf]
                %522 = vst [vmem:[%s516 + $0x8] sm:$0xf] %v521
                %v523 = vld [vmem:[%s515 + $0x18] sm:$0xf]
                %524 = vst [vmem:[%s516 + $0xc] sm:$0xf] %v523
              $region89: #{tpu_custom_call.1} parent=83 // loop_footer
                %s514 = sadd.s32 1, %s510
              $region90: #{tpu_custom_call.1} parent=83 // loop_footer_branch
                %509 = sbr.rel target = $region86
              $region91: #{tpu_custom_call.1} parent=83 // loop_exit
                _
            $region84: #{tpu_custom_call.1} parent=75 // pred_fallthru
              _
          $region76: #{tpu_custom_call.1} parent=71 // pred_fallthru
            _
          %552 = vnop
        $region72: #{tpu_custom_call.1} parent=63 // pred_fallthru
          _
        // Predicated region
        $region110: #{tpu_custom_call.1} parent=63 // pred_check
          %p553 = pneg %p113
        $region111: #{tpu_custom_call.1} parent=63 // pred_check_branch
          %555 = sbr.rel (%p553) target = $region113
        $region112: #{tpu_custom_call.1} parent=63 // pred_region
          %p556 = scmp.lt.s32.totalorder %s32, 1
          %s557 = scalar_select %p556, %s32, 1
          %s558 = smul.addr %s557, 4
          %s559 = smul.addr %s558, 4
          %s560 = scalar_lea.vmem %s2, %s559
        $region113: #{tpu_custom_call.1} parent=63 // pred_fallthru
          _
        // Predicated region
        $region114: #{tpu_custom_call.1} parent=63 // pred_check
          %p561 = pneg %p139
        $region115: #{tpu_custom_call.1} parent=63 // pred_check_branch
          %563 = sbr.rel (%p561) target = $region117
        $region116: #{tpu_custom_call.1} parent=63 // pred_region
          %p564 = scmp.lt.s32.totalorder %s32, 1
          %s565 = scalar_select %p564, %s32, 1
          %s566 = smul.addr %s565, 8
          %s567 = smul.addr %s566, 4
          %s568 = scalar_lea.vmem %s3, %s567
        $region117: #{tpu_custom_call.1} parent=63 // pred_fallthru
          _
      $region64: #{tpu_custom_call.1} parent=5 // pred_fallthru
        _
      %p569 = scmp.le.s32.totalorder 1, %s25
      %p570 = scmp.lt.s32.totalorder %s25, 5
      %p571 = pnand %p569, %p570
      %p572 = pneg %p571
      // Predicated region
      $region118: #{tpu_custom_call.1} parent=5 // pred_check
        _
      $region119: #{tpu_custom_call.1} parent=5 // pred_check_branch
        %574 = sbr.rel (%p571) target = $region121
      $region120: #{tpu_custom_call.1} parent=5 // pred_region
        %s575 = ssub.s32 %s25, 1
        %s576 = sand.u32 %s80, 1
        %s577 = sand.u32 %s80, 1
        %s578 = smul.addr %s577, 16
        %s579 = scalar_lea.vmem [#allocation3], %s578
        // Predicated region
        $region122: #{tpu_custom_call.1} parent=120 // pred_check
          %p580 = pneg %p93
        $region123: #{tpu_custom_call.1} parent=120 // pred_check_branch
          %582 = sbr.rel (%p580) target = $region125
        $region124: #{tpu_custom_call.1} parent=120 // pred_region
          _
        $region125: #{tpu_custom_call.1} parent=120 // pred_fallthru
          _
        %p583 = scmp.lt.s32.totalorder %s34, 1
        %s584 = scalar_select %p583, %s34, 1
        %p585 = scmp.lt.s32.totalorder %s35, 1
        %s586 = scalar_select %p585, %s35, 1
        %s587 = smul.addr %s584, 2
        %s588 = sadd.s32 %s586, %s587
        %s589 = smul.addr %s588, 8
        %s590 = scalar_lea.vmem %s0, %s589
        %p591 = pneg %p65
        %p592 = pneg %p62
        %s593 = sand.u32 %s80, 1
        %s594 = sand.u32 %s80, 1
        %s595 = smul.addr %s594, 16
        %s596 = scalar_lea.vmem [#allocation3], %s595
        %p597 = pneg %p93
        %p598 = pneg %p90
        %p599 = scmp.lt.s32.totalorder %s34, 1
        %s600 = scalar_select %p599, %s34, 1
        %s601 = smul.addr %s600, 4
        %s602 = smul.addr %s601, 4
        %s603 = scalar_lea.vmem %s2, %s602
        %p604 = pneg %p119
        %p605 = pneg %p116
        %p606 = scmp.lt.s32.totalorder %s34, 1
        %s607 = scalar_select %p606, %s34, 1
        %s608 = smul.addr %s607, 8
        %s609 = smul.addr %s608, 4
        %s610 = scalar_lea.vmem %s3, %s609
        %p611 = pneg %p145
        %p612 = pneg %p142
        %p613 = pneg %p166
        %p614 = pneg %p163
        %p615 = pneg %p187
        %p616 = pneg %p184
        %p617 = pneg %p208
        %p618 = pneg %p205
        %p619 = pneg %p229
        %p620 = pneg %p226
        %p621 = pneg %p250
        %p622 = pneg %p247
        %p623 = pneg %p271
        %p624 = pneg %p268
        %p625 = pneg %p292
        %p626 = pneg %p289
        %p627 = pneg %p313
        %p628 = pneg %p310
        %p629 = pneg %p334
        %p630 = pneg %p331
        %p631 = pneg %p355
        %p632 = pneg %p352
        %p633 = pneg %p376
        %p634 = pneg %p373
        %p635 = pneg %p397
        %p636 = pneg %p394
        %p637 = pneg %p425
        %p638 = pneg %p422
        %s639 = sand.u32 %s412, 1
        %s640 = scalar_lea.sflag [#allocation5], %s639
        %s641 = sand.u32 %s412, 1
        %s642 = smul.addr %s641, 4
        %s643 = scalar_lea.vmem [#allocation4], %s642
        %p644 = scmp.lt.s32.totalorder %s34, 1
        %s645 = scalar_select %p644, %s34, 1
        %p646 = scmp.lt.s32.totalorder %s35, 1
        %s647 = scalar_select %p646, %s35, 1
        %s648 = smul.addr %s645, 2
        %s649 = sadd.s32 %s647, %s648
        %s650 = smul.addr %s649, 8
        %s651 = scalar_lea.vmem %s0, %s650
        %p652 = scmp.lt.s32.totalorder %s34, 1
        %s653 = scalar_select %p652, %s34, 1
        %s654 = smul.addr %s653, 4
        %s655 = smul.addr %s654, 4
        %s656 = scalar_lea.vmem %s2, %s655
        %p657 = scmp.lt.s32.totalorder %s34, 1
        %s658 = scalar_select %p657, %s34, 1
        %s659 = smul.addr %s658, 8
        %s660 = smul.addr %s659, 4
        %s661 = scalar_lea.vmem %s3, %s660
        %v663 = vlaneseq
        %v664 = vand.u32 %v663, 127
        %vm665 = vcmp.lt.s32.totalorder %v664, 10
        %v666 = vsel %vm665, 0.0, -1e+30
        %vm667 = vcmask 261120
        %668 = vst.msk [vmem:[#allocation2] sm:$0xff] %vm667, 0.0
        loop: start=0, step=1, limit=4
        $region126: #{tpu_custom_call.1} parent=120 // loop_pre_header
          _
        $region127: #{tpu_custom_call.1} parent=120 // loop_header
          %s670 = sphi 0, %s674
          %p671 = scmp.ge.s32.totalorder %s670, 4
        $region128: #{tpu_custom_call.1} parent=120 // loop_header_branch
          %673 = sbr.rel (%p671) target = $region132
        $region129: #{tpu_custom_call.1} parent=120 // loop_body
          %s675 = smul.addr %s670, 4
          %s676 = scalar_lea.vmem %s579, %s675 [#allocation3]
          %v677 = vld [vmem:[%s676] sm:$0xf]
          %s678 = smul.addr %s670, 4
          %s679 = scalar_lea.vmem %s656, %s678
          %v680 = vld [vmem:[%s679] sm:$0xf]
          %vm681 = vcmask 64512
          %v683 = vsel %vm681, %v677, 0
          %vm685 = vcmask 1043456
          %v687 = vsel %vm685, %v680, 0
          %689 = vmatprep.subr.bf16.mxu0 0
          %690 = vmatpush1.bf16.msra.mxu0 %v687
          %691 = vmatprep.subr.bf16.mxu0 0
          %692 = vmatpush1.bf16.msra.mxu0 0
          %693 = vmatprep.subr.bf16.mxu0 0
          %694 = vmatpush1.bf16.msra.mxu0 0
          %695 = vmatprep.subr.bf16.mxu0 0
          %696 = vmatpush1.bf16.msra.mxu0 0
          %697 = vmatprep.subr.bf16.mxu0 0
          %698 = vmatpush1.bf16.msra.mxu0 0
          %699 = vmatprep.subr.bf16.mxu0 0
          %700 = vmatpush1.bf16.msra.mxu0 0
          %701 = vmatprep.subr.bf16.mxu0 0
          %702 = vmatpush1.bf16.msra.mxu0 0
          %703 = vmatprep.subr.bf16.mxu0 0
          %704 = vmatpush1.bf16.msra.mxu0 0
          %705 = vmatprep.subr.bf16.mxu0 0
          %706 = vmatpush1.bf16.msra.mxu0 0
          %707 = vmatprep.subr.bf16.mxu0 0
          %708 = vmatpush1.bf16.msra.mxu0 0
          %709 = vmatprep.subr.bf16.mxu0 0
          %710 = vmatpush1.bf16.msra.mxu0 0
          %711 = vmatprep.subr.bf16.mxu0 0
          %712 = vmatpush1.bf16.msra.mxu0 0
          %713 = vmatprep.subr.bf16.mxu0 0
          %714 = vmatpush1.bf16.msra.mxu0 0
          %715 = vmatprep.subr.bf16.mxu0 0
          %716 = vmatpush1.bf16.msra.mxu0 0
          %717 = vmatprep.subr.bf16.mxu0 0
          %718 = vmatpush1.bf16.msra.mxu0 0
          %719 = vmatprep.subr.bf16.mxu0 0
          %720 = vmatpush1.bf16.msra.mxu0 0
          %721 = vmatprep.mubr.bf16.mxu0 0
          %722 = vmatmul.mubr.bf16.gmra.mrb[0].mxu0 %v683
          %v723 = vpop.f32.mrb[0].mxu0
          %v724 = vadd.f32 %v666, %v723
          %v725 = vpop.f32.mrb[0].mxu0
          %v726 = vpop.f32.mrb[0].mxu0
          %v727 = vpop.f32.mrb[0].mxu0
          %728 = vdwg.mxu0
          %vm729 = vcmask 130048
          %v730 = vsel %vm729, %v724, -inf
          %731 = vmax.xlane.f32.xlu0 %v730
          %v732 = vpop.xlane.xlu0 %731
          %v733 = vsub.f32 %v724, %v732
          %v734 = vmul.f32 %v733, 1.442695
          %v735 = vpow.pop %v734
          %v736 = vsel %vm729, %v735, 0.0
          %737 = vadd.xlane.f32.xlu0 %v736
          %v738 = vpop.xlane.xlu0 %737
          %v739 = vrcp.pop %v738
          %v740 = vmul.f32 %v735, %v739
          %v741 = vpack.c.bf16 %v740, %v740
          %s742 = smul.u32 %s670, 2
          %s743 = smul.addr %s742, 4
          %s744 = scalar_lea.vmem %s661, %s743
          %v745 = vld [vmem:[%s744] sm:$0xf]
          %v746 = vld [vmem:[%s744 + $0x4] sm:$0xf]
          %v749 = vunpack.c.l.b16 %v745
          %v750 = vunpack.c.l.b16 %v746
          %v751 = vpack.c.b16 %v750, %v749
          %v754 = vsel %vm729, %v741, 0
          %756 = vmatprep.subr.bf16.mxu0 0
          %757 = vmatpush1.bf16.msra.mxu0 %v751
          %758 = vmatprep.subr.bf16.mxu0 0
          %759 = vmatpush1.bf16.msra.mxu0 0
          %760 = vmatprep.subr.bf16.mxu0 0
          %761 = vmatpush1.bf16.msra.mxu0 0
          %762 = vmatprep.subr.bf16.mxu0 0
          %763 = vmatpush1.bf16.msra.mxu0 0
          %764 = vmatprep.subr.bf16.mxu0 0
          %765 = vmatpush1.bf16.msra.mxu0 0
          %766 = vmatprep.subr.bf16.mxu0 0
          %767 = vmatpush1.bf16.msra.mxu0 0
          %768 = vmatprep.subr.bf16.mxu0 0
          %769 = vmatpush1.bf16.msra.mxu0 0
          %770 = vmatprep.subr.bf16.mxu0 0
          %771 = vmatpush1.bf16.msra.mxu0 0
          %772 = vmatprep.subr.bf16.mxu0 0
          %773 = vmatpush1.bf16.msra.mxu0 0
          %774 = vmatprep.subr.bf16.mxu0 0
          %775 = vmatpush1.bf16.msra.mxu0 0
          %776 = vmatprep.subr.bf16.mxu0 0
          %777 = vmatpush1.bf16.msra.mxu0 0
          %778 = vmatprep.subr.bf16.mxu0 0
          %779 = vmatpush1.bf16.msra.mxu0 0
          %780 = vmatprep.subr.bf16.mxu0 0
          %781 = vmatpush1.bf16.msra.mxu0 0
          %782 = vmatprep.subr.bf16.mxu0 0
          %783 = vmatpush1.bf16.msra.mxu0 0
          %784 = vmatprep.subr.bf16.mxu0 0
          %785 = vmatpush1.bf16.msra.mxu0 0
          %786 = vmatprep.subr.bf16.mxu0 0
          %787 = vmatpush1.bf16.msra.mxu0 0
          %788 = vmatprep.mubr.bf16.mxu0 0
          %789 = vmatmul.mubr.bf16.gmra.mrb[0].mxu0 %v754
          %v790 = vpop.f32.mrb[0].mxu0
          %v791 = vadd.f32 0.0, %v790
          %v792 = vpop.f32.mrb[0].mxu0
          %v793 = vpop.f32.mrb[0].mxu0
          %v794 = vpop.f32.mrb[0].mxu0
          %795 = vdwg.mxu0
          %v796 = vld [vmem:[#allocation2] sm:$0xff]
          %v797 = vpack.c.bf16 %v791, %v791
          %s798 = smul.addr %s670, 4
          %s799 = scalar_lea.vmem %s4, %s798
          %v800 = vld [vmem:[%s799] sm:$0xf]
          %v802 = vsel %vm681, %v797, 0
          %v805 = vsel %vm685, %v800, 0
          %807 = vmatprep.subr.bf16.mxu0 0
          %808 = vmatpush1.bf16.msra.mxu0 %v805
          %809 = vmatprep.subr.bf16.mxu0 0
          %810 = vmatpush1.bf16.msra.mxu0 0
          %811 = vmatprep.subr.bf16.mxu0 0
          %812 = vmatpush1.bf16.msra.mxu0 0
          %813 = vmatprep.subr.bf16.mxu0 0
          %814 = vmatpush1.bf16.msra.mxu0 0
          %815 = vmatprep.subr.bf16.mxu0 0
          %816 = vmatpush1.bf16.msra.mxu0 0
          %817 = vmatprep.subr.bf16.mxu0 0
          %818 = vmatpush1.bf16.msra.mxu0 0
          %819 = vmatprep.subr.bf16.mxu0 0
          %820 = vmatpush1.bf16.msra.mxu0 0
          %821 = vmatprep.subr.bf16.mxu0 0
          %822 = vmatpush1.bf16.msra.mxu0 0
          %823 = vmatprep.subr.bf16.mxu0 0
          %824 = vmatpush1.bf16.msra.mxu0 0
          %825 = vmatprep.subr.bf16.mxu0 0
          %826 = vmatpush1.bf16.msra.mxu0 0
          %827 = vmatprep.subr.bf16.mxu0 0
          %828 = vmatpush1.bf16.msra.mxu0 0
          %829 = vmatprep.subr.bf16.mxu0 0
          %830 = vmatpush1.bf16.msra.mxu0 0
          %831 = vmatprep.subr.bf16.mxu0 0
          %832 = vmatpush1.bf16.msra.mxu0 0
          %833 = vmatprep.subr.bf16.mxu0 0
          %834 = vmatpush1.bf16.msra.mxu0 0
          %835 = vmatprep.subr.bf16.mxu0 0
          %836 = vmatpush1.bf16.msra.mxu0 0
          %837 = vmatprep.subr.bf16.mxu0 0
          %838 = vmatpush1.bf16.msra.mxu0 0
          %839 = vmatprep.mubr.bf16.mxu0 0
          %840 = vmatmul.mubr.bf16.gmra.mrb[0].mxu0 %v802
          %v841 = vpop.f32.mrb[0].mxu0
          %v842 = vadd.f32 0.0, %v841
          %v843 = vpop.f32.mrb[0].mxu0
          %v844 = vpop.f32.mrb[0].mxu0
          %v845 = vpop.f32.mrb[0].mxu0
          %846 = vdwg.mxu0
          %v847 = vadd.f32 %v796, %v842
          %848 = vst.msk [vmem:[#allocation2] sm:$0xff] %vm667, %v847
        $region130: #{tpu_custom_call.1} parent=120 // loop_footer
          %s674 = sadd.s32 1, %s670
        $region131: #{tpu_custom_call.1} parent=120 // loop_footer_branch
          %669 = sbr.rel target = $region127
        $region132: #{tpu_custom_call.1} parent=120 // loop_exit
          _
        %v849 = vld [vmem:[%s651] sm:$0xff]
        %v850 = vld [vmem:[#allocation2] sm:$0xff]
        %v851 = vld [vmem:[%s5] sm:$0x1]
        %v853 = vlaneseq
        %v854 = vshrl.u32 %v853, 7
        %v855 = vsub.s32 0, %v854
        %v856 = vrot.slane %v851, %v855
        %v858 = vadd.f32 %v850, %v856
        %v859 = vadd.f32 %v849, %v858
        %v860 = vld [vmem:[%s6] sm:$0x1]
        %v861 = vld [vmem:[%s7] sm:$0x1]
        %v862 = vsel %vm667, %v859, 0.0
        %863 = vadd.xlane.f32.xlu0 %v862
        %v864 = vpop.xlane.xlu0 %863
        %v865 = vrcp.pop 32.0
        %v866 = vmul.f32 %v864, %v865
        %v867 = vsub.f32 %v859, %v866
        %v868 = vmul.f32 %v867, %v867
        %v869 = vsel %vm667, %v868, 0.0
        %870 = vadd.xlane.f32.xlu0 %v869
        %v871 = vpop.xlane.xlu0 %870
        %v872 = vmul.f32 %v871, %v865
        %v873 = vadd.f32 %v872, 1e-05
        %v874 = vrsqrt.pop %v873
        %v875 = vmul.f32 %v867, %v874
        %v877 = vlaneseq
        %v878 = vshrl.u32 %v877, 7
        %v879 = vsub.s32 0, %v878
        %v880 = vrot.slane %v860, %v879
        %v882 = vmul.f32 %v875, %v880
        %v884 = vlaneseq
        %v885 = vshrl.u32 %v884, 7
        %v886 = vsub.s32 0, %v885
        %v887 = vrot.slane %v861, %v886
        %v889 = vadd.f32 %v882, %v887
        %v890 = vpack.c.bf16 %v889, %v889
        %v891 = vld [vmem:[%s8] sm:$0xf]
        %v892 = vld [vmem:[%s8 + $0x4] sm:$0xf]
        %v893 = vld [vmem:[%s8 + $0x8] sm:$0xf]
        %v894 = vld [vmem:[%s8 + $0xc] sm:$0xf]
        %v895 = vld [vmem:[%s9] sm:$0x1]
        %v897 = vlaneseq
        %v898 = vshrl.u32 %v897, 7
        %v899 = vsub.s32 0, %v898
        %v900 = vrot.slane %v895, %v899
        %v906 = vunpack.c.l.b16 %v891
        %v907 = vunpack.c.l.b16 %v892
        %v908 = vunpack.c.l.b16 %v893
        %v909 = vunpack.c.l.b16 %v894
        %v910 = vpack.c.b16 %v907, %v906
        %v911 = vpack.c.b16 %v909, %v908
        %v915 = vsel %vm667, %v890, 0
        %917 = vmatprep.subr.bf16.mxu0 0
        %918 = vmatpush1.bf16.msra.mxu0 %v910
        %919 = vmatprep.subr.bf16.mxu0 0
        %920 = vmatpush1.bf16.msra.mxu0 %v911
        %921 = vmatprep.subr.bf16.mxu0 0
        %922 = vmatpush1.bf16.msra.mxu0 0
        %923 = vmatprep.subr.bf16.mxu0 0
        %924 = vmatpush1.bf16.msra.mxu0 0
        %925 = vmatprep.subr.bf16.mxu0 0
        %926 = vmatpush1.bf16.msra.mxu0 0
        %927 = vmatprep.subr.bf16.mxu0 0
        %928 = vmatpush1.bf16.msra.mxu0 0
        %929 = vmatprep.subr.bf16.mxu0 0
        %930 = vmatpush1.bf16.msra.mxu0 0
        %931 = vmatprep.subr.bf16.mxu0 0
        %932 = vmatpush1.bf16.msra.mxu0 0
        %933 = vmatprep.subr.bf16.mxu0 0
        %934 = vmatpush1.bf16.msra.mxu0 0
        %935 = vmatprep.subr.bf16.mxu0 0
        %936 = vmatpush1.bf16.msra.mxu0 0
        %937 = vmatprep.subr.bf16.mxu0 0
        %938 = vmatpush1.bf16.msra.mxu0 0
        %939 = vmatprep.subr.bf16.mxu0 0
        %940 = vmatpush1.bf16.msra.mxu0 0
        %941 = vmatprep.subr.bf16.mxu0 0
        %942 = vmatpush1.bf16.msra.mxu0 0
        %943 = vmatprep.subr.bf16.mxu0 0
        %944 = vmatpush1.bf16.msra.mxu0 0
        %945 = vmatprep.subr.bf16.mxu0 0
        %946 = vmatpush1.bf16.msra.mxu0 0
        %947 = vmatprep.subr.bf16.mxu0 0
        %948 = vmatpush1.bf16.msra.mxu0 0
        %949 = vmatprep.mubr.bf16.mxu0 0
        %950 = vmatmul.mubr.bf16.gmra.mrb[0].mxu0 %v915
        %v951 = vpop.f32.mrb[0].mxu0
        %v952 = vadd.f32 %v900, %v951
        %v953 = vpop.f32.mrb[0].mxu0
        %v954 = vpop.f32.mrb[0].mxu0
        %v955 = vpop.f32.mrb[0].mxu0
        %956 = vdwg.mxu0
        %v957 = vmax.f32 %v952, 0.0
        %v958 = vpack.c.bf16 %v957, %v957
        %v959 = vld [vmem:[%s10] sm:$0xf]
        %v960 = vld [vmem:[%s10 + $0x4] sm:$0xf]
        %v961 = vld [vmem:[%s10 + $0x8] sm:$0xf]
        %v962 = vld [vmem:[%s10 + $0xc] sm:$0xf]
        %v963 = vld [vmem:[%s10 + $0x10] sm:$0xf]
        %v964 = vld [vmem:[%s10 + $0x14] sm:$0xf]
        %v965 = vld [vmem:[%s10 + $0x18] sm:$0xf]
        %v966 = vld [vmem:[%s10 + $0x1c] sm:$0xf]
        %v967 = vld [vmem:[%s11] sm:$0x1]
        %v969 = vlaneseq
        %v970 = vshrl.u32 %v969, 7
        %v971 = vsub.s32 0, %v970
        %v972 = vrot.slane %v967, %v971
        %v982 = vunpack.c.l.b16 %v959
        %v983 = vunpack.c.l.b16 %v960
        %v984 = vunpack.c.l.b16 %v961
        %v985 = vunpack.c.l.b16 %v962
        %v986 = vunpack.c.l.b16 %v963
        %v987 = vunpack.c.l.b16 %v964
        %v988 = vunpack.c.l.b16 %v965
        %v989 = vunpack.c.l.b16 %v966
        %v990 = vpack.c.b16 %v983, %v982
        %v991 = vpack.c.b16 %v985, %v984
        %v992 = vpack.c.b16 %v987, %v986
        %v993 = vpack.c.b16 %v989, %v988
        %vm998 = vcmask 523264
        %v1000 = vsel %vm998, %v958, 0
        %1002 = vmatprep.subr.bf16.mxu0 0
        %1003 = vmatpush1.bf16.msra.mxu0 %v990
        %1004 = vmatprep.subr.bf16.mxu0 0
        %1005 = vmatpush1.bf16.msra.mxu0 %v991
        %1006 = vmatprep.subr.bf16.mxu0 0
        %1007 = vmatpush1.bf16.msra.mxu0 %v992
        %1008 = vmatprep.subr.bf16.mxu0 0
        %1009 = vmatpush1.bf16.msra.mxu0 %v993
        %1010 = vmatprep.subr.bf16.mxu0 0
        %1011 = vmatpush1.bf16.msra.mxu0 0
        %1012 = vmatprep.subr.bf16.mxu0 0
        %1013 = vmatpush1.bf16.msra.mxu0 0
        %1014 = vmatprep.subr.bf16.mxu0 0
        %1015 = vmatpush1.bf16.msra.mxu0 0
        %1016 = vmatprep.subr.bf16.mxu0 0
        %1017 = vmatpush1.bf16.msra.mxu0 0
        %1018 = vmatprep.subr.bf16.mxu0 0
        %1019 = vmatpush1.bf16.msra.mxu0 0
        %1020 = vmatprep.subr.bf16.mxu0 0
        %1021 = vmatpush1.bf16.msra.mxu0 0
        %1022 = vmatprep.subr.bf16.mxu0 0
        %1023 = vmatpush1.bf16.msra.mxu0 0
        %1024 = vmatprep.subr.bf16.mxu0 0
        %1025 = vmatpush1.bf16.msra.mxu0 0
        %1026 = vmatprep.subr.bf16.mxu0 0
        %1027 = vmatpush1.bf16.msra.mxu0 0
        %1028 = vmatprep.subr.bf16.mxu0 0
        %1029 = vmatpush1.bf16.msra.mxu0 0
        %1030 = vmatprep.subr.bf16.mxu0 0
        %1031 = vmatpush1.bf16.msra.mxu0 0
        %1032 = vmatprep.subr.bf16.mxu0 0
        %1033 = vmatpush1.bf16.msra.mxu0 0
        %1034 = vmatprep.mubr.bf16.mxu0 0
        %1035 = vmatmul.mubr.bf16.gmra.mrb[0].mxu0 %v1000
        %v1036 = vpop.f32.mrb[0].mxu0
        %v1037 = vadd.f32 %v972, %v1036
        %v1038 = vpop.f32.mrb[0].mxu0
        %v1039 = vpop.f32.mrb[0].mxu0
        %v1040 = vpop.f32.mrb[0].mxu0
        %1041 = vdwg.mxu0
        %v1042 = vadd.f32 %v889, %v1037
        %v1043 = vld [vmem:[%s12] sm:$0x1]
        %v1044 = vld [vmem:[%s13] sm:$0x1]
        %v1045 = vsel %vm667, %v1042, 0.0
        %1046 = vadd.xlane.f32.xlu0 %v1045
        %v1047 = vpop.xlane.xlu0 %1046
        %v1048 = vmul.f32 %v1047, %v865
        %v1049 = vsub.f32 %v1042, %v1048
        %v1050 = vmul.f32 %v1049, %v1049
        %v1051 = vsel %vm667, %v1050, 0.0
        %1052 = vadd.xlane.f32.xlu0 %v1051
        %v1053 = vpop.xlane.xlu0 %1052
        %v1054 = vmul.f32 %v1053, %v865
        %v1055 = vadd.f32 %v1054, 1e-05
        %v1056 = vrsqrt.pop %v1055
        %v1057 = vmul.f32 %v1049, %v1056
        %v1059 = vlaneseq
        %v1060 = vshrl.u32 %v1059, 7
        %v1061 = vsub.s32 0, %v1060
        %v1062 = vrot.slane %v1043, %v1061
        %v1064 = vmul.f32 %v1057, %v1062
        %v1066 = vlaneseq
        %v1067 = vshrl.u32 %v1066, 7
        %v1068 = vsub.s32 0, %v1067
        %v1069 = vrot.slane %v1044, %v1068
        %v1071 = vadd.f32 %v1064, %v1069
        %v1072 = vpack.c.bf16 %v1071, %v1071
        %vm1073 = vcmask 257024
        %1074 = vst.msk [vmem:[%s643] sm:$0xf] %vm1073, %v1072
        %s1075 = sand.u32 %s412, 1
        %s1076 = scalar_lea.sflag [#allocation5], %s1075
        %s1077 = sand.u32 %s412, 1
        %s1078 = smul.addr %s1077, 4
        %s1079 = scalar_lea.vmem [#allocation4], %s1078
        // Predicated region
        $region133: #{tpu_custom_call.1} parent=120 // pred_check
          %p1080 = pneg %p422
        $region134: #{tpu_custom_call.1} parent=120 // pred_check_branch
          %1082 = sbr.rel (%p1080) target = $region136
        $region135: #{tpu_custom_call.1} parent=120 // pred_region
          %s1084 = ssub.s32 64, 64
          %1085 = vsyncadd %s1076, %s1084
          %s1086 = smul.addr %s34, 2
          %s1087 = sadd.s32 %s35, %s1086
          %s1088 = smul.addr %s1087, 64
          %s1089 = scalar_lea.hbm %s16, %s1088
          %s1091 = sshll.u32 %s1079, 4
          %s1092 = int_to_ptr.vmem [resolvable:$true] %s1091
          %1094 = dma.vmem_to_hbm [thread:$0]  %s1092, 64, %s1089, %s1076
        $region136: #{tpu_custom_call.1} parent=120 // pred_fallthru
          _
      $region121: #{tpu_custom_call.1} parent=5 // pred_fallthru
        _
      %p1095 = scmp.le.s32.totalorder 2, %s25
      // Predicated region
      $region137: #{tpu_custom_call.1} parent=5 // pred_check
        %p1096 = pneg %p1095
      $region138: #{tpu_custom_call.1} parent=5 // pred_check_branch
        %1098 = sbr.rel (%p1096) target = $region140
      $region139: #{tpu_custom_call.1} parent=5 // pred_region
        %s1099 = ssub.s32 %s25, 2
        // Predicated region
        $region141: #{tpu_custom_call.1} parent=139 // pred_check
          %p1100 = pneg %p428
        $region142: #{tpu_custom_call.1} parent=139 // pred_check_branch
          %1102 = sbr.rel (%p1100) target = $region144
        $region143: #{tpu_custom_call.1} parent=139 // pred_region
          %s1103 = sand.u32 %s413, 1
          %s1104 = scalar_lea.sflag [#allocation5], %s1103
          %s1105 = sand.u32 %s413, 1
          %s1106 = smul.addr %s1105, 4
          %s1107 = scalar_lea.vmem [#allocation4], %s1106
          %1108 = dma.done %s1104, 64
        $region144: #{tpu_custom_call.1} parent=139 // pred_fallthru
          _
      $region140: #{tpu_custom_call.1} parent=5 // pred_fallthru
        _
    $region6: #{tpu_custom_call.1} parent=1 // loop_footer
      %s29 = sadd.s32 1, %s25
    $region7: #{tpu_custom_call.1} parent=1 // loop_footer_branch
      %24 = sbr.rel target = $region3
    $region8: #{tpu_custom_call.1} parent=1 // loop_exit
      _
    %1109 = vsyncpa [#allocation5], 1
    %s1110 = scalar_lea.sflag [#allocation5], 1
    %1111 = vsyncpa %s1110, 1

</llo_original>
